<compile_context>
chip_gen: v5e
topology: v5e:2x2
jax: 0.10.0
libtpu: 0.0.40
codegen_flags: <defaults>
</compile_context>

<pallas_src>
import functools

import jax
import jax.numpy as jnp
import numpy as np
from jax import lax
from jax.experimental import pallas as pl
from jax.experimental.pallas import tpu as pltpu

_VMEM = pl.BlockSpec(memory_space=pltpu.MemorySpace.VMEM)

_PARAM_ORDER = ("w1", "b1", "w2", "b2", "w3", "b3",
                "wvfc", "bvfc", "wafc", "bafc",
                "waat", "baat", "wvat", "bvat",
                "wf", "bf", "wh1", "bh1", "wh2", "bh2")


# -----------------------------------------------------------------------------
# The single fused kernel: entire forward pass, everything VMEM-resident.
# -----------------------------------------------------------------------------
def _make_kernel(k, ow1, oh2, ow2, rstart, cstart):
    """Kernel specialized (at trace time) to the static conv geometry."""

    def kernel(audio_ref, p1_ref,
               w1_ref, b1_ref, w2_ref, b2_ref, w3_ref, b3_ref,
               wvfc_ref, bvfc_ref, wafc_ref, bafc_ref,
               waat_ref, baat_ref, wvat_ref, bvat_ref,
               wf_ref, bf_ref, wh1_ref, bh1_ref, wh2_ref, bh2_ref,
               q_ref):
        B = audio_ref.shape[0]
        action_dim = q_ref.shape[1]

        def dense(x, w_ref, b_ref, relu=True):
            # f32 operands + f32 accumulation: at these sizes the kernel is
            # DMA/latency bound, so bf16 MXU operands buy nothing measurable and
            # f32 keeps exact parity with the torch module.
            y = jnp.dot(x, w_ref[...], preferred_element_type=jnp.float32) + b_ref[...]
            return jnp.maximum(y, 0.0) if relu else y

        # ---- video tower -----------------------------------------------------
        # conv1: patches were built (and phase-permuted) by the wrapper -> 1 matmul.
        # h1 rows are (conv1-output-position, batch) with positions in the
        # phase-permuted grid order.
        h1 = dense(p1_ref[...], w1_ref, b1_ref)                 # (oh1*ow1*B, 16)

        # conv2: every stride-s tap is a contiguous run of h1 rows thanks to the
        # phase permutation -> per output row: 9 row-slices + lane-concat + 1 matmul.
        h2_rows = []
        for y in range(oh2):
            taps = []
            for ky in range(k):
                i = rstart[ky] + y                              # permuted grid row
                for kx in range(k):
                    start = (i * ow1 + cstart[kx]) * B
                    taps.append(h1[start:start + ow2 * B, :])   # (ow2*B, 16)
            p2 = jnp.concatenate(taps, axis=1)                  # (ow2*B, k*k*16)
            h2_rows.append(dense(p2, w2_ref, b2_ref))           # (ow2*B, 32)

        # conv3 covers its full (oh2 x ow2) input window (1x1 output), so
        # conv3 + torch Flatten is one matmul over lane-concatenated position slabs.
        slabs = [h2_rows[y][x * B:(x + 1) * B, :]
                 for y in range(oh2) for x in range(ow2)]
        p3 = jnp.concatenate(slabs, axis=1)                     # (B, oh2*ow2*32)
        h3 = dense(p3, w3_ref, b3_ref)                          # (B, 64)
        vf = dense(h3, wvfc_ref, bvfc_ref)                      # (B, hidden)

        # ---- audio tower -------------------------------------------------------
        af = dense(audio_ref[...], wafc_ref, bafc_ref)          # (B, hidden)

        # ---- attention gating (see TODO(synk) in the header) -------------------
        def gate(feat, w_ref, b_ref):
            logits = jnp.dot(feat, w_ref[...],
                             preferred_element_type=jnp.float32) + b_ref[...]
            logits = logits - jnp.max(logits, axis=-1, keepdims=True)
            e = jnp.exp(logits)
            inv = pl.reciprocal(jnp.sum(e, axis=-1, keepdims=True), approx=True)
            return (e * inv) * feat

        a_att = gate(af, waat_ref, baat_ref)
        v_att = gate(vf, wvat_ref, bvat_ref)

        # feature = relu(cat([a_att, v_att], 1) @ Wf + bf): single fused matmul.
        h = dense(jnp.concatenate([a_att, v_att], axis=1), wf_ref, bf_ref)

        # Dueling heads fused: one (hidden -> 2*hidden) matmul for both hidden
        # layers, then one block-diagonal (2*hidden -> action_dim+1) matmul that
        # yields [advantage | value] in a single MXU pass.
        hh = dense(h, wh1_ref, bh1_ref)                         # (B, 2*hidden)
        av = dense(hh, wh2_ref, bh2_ref, relu=False)            # (B, action_dim+1)
        adv = av[:, :action_dim]
        val = av[:, action_dim:action_dim + 1]
        q_ref[...] = val + adv - jnp.mean(adv, axis=-1, keepdims=True)

    return kernel


# -----------------------------------------------------------------------------
# Wrapper
# -----------------------------------------------------------------------------
def make_forward(cfg):
    kernel = _make_kernel(cfg["k"], cfg["ow1"], cfg["oh2"], cfg["ow2"],
                          cfg["rstart"], cfg["cstart"])
    n_pos3 = cfg["oh2"] * cfg["ow2"]

    @jax.jit
    def forward(prep, audio, video_nchw):
        """audio: (B, sound_dim) f32; video_nchw: (B, C, H, W) with 0..255 values."""
        B = audio.shape[0]
        patch_rows, patch_len = prep["gather_idx"].shape

        # Wrapper-side im2col for conv1 only (a single ~14 KB gather at B=2).
        # The /255 of `video.float()/255` is folded into the conv1 weights.
        video_flat = video_nchw.astype(jnp.float32).reshape(B, -1)
        p1 = jnp.take(video_flat, prep["gather_idx"], axis=1)       # (B, P1, C*k*k)
        p1 = p1.transpose(1, 0, 2).reshape(patch_rows * B, patch_len)  # pos-major

        args = (audio.astype(jnp.float32), p1) + tuple(prep[n] for n in _PARAM_ORDER)
        action_dim = prep["wh2"].shape[1] - 1

        def mm_flops(rows, name):
            w = prep[name]
            return 2 * rows * w.shape[0] * w.shape[1]

        flops = (mm_flops(patch_rows * B, "w1") + mm_flops(n_pos3 * B, "w2")
                 + mm_flops(B, "w3") + mm_flops(B, "wvfc") + mm_flops(B, "wafc")
                 + mm_flops(B, "waat") + mm_flops(B, "wvat") + mm_flops(B, "wf")
                 + mm_flops(B, "wh1") + mm_flops(B, "wh2"))
        bytes_accessed = (sum(int(np.prod(a.shape)) * a.dtype.itemsize for a in args)
                          + B * action_dim * 4)

        return pl.pallas_call(
            kernel,
            out_shape=jax.ShapeDtypeStruct((B, action_dim), jnp.float32),
            in_specs=[_VMEM] * len(args),
            out_specs=_VMEM,
            cost_estimate=pl.CostEstimate(
                flops=int(flops),
                transcendentals=int(2 * B * cfg["hidden"]),
                bytes_accessed=int(bytes_accessed)),
            # Total VMEM residency is ~0.2 MiB: comfortably inside the default
            # scoped VMEM on v5e (16 MiB), v6e (32 MiB) and v7x (32 of 64 MiB),
            # so no vmem_limit_bytes override is needed.
            # TODO(synk): for large batches add a batch grid axis with
            # dimension_semantics=("parallel",) (re-budget VMEM for v7x's 64 MiB),
            # and/or prefetch weights across calls (P10) to hide the per-step DMA.
        )(*args)

    return forward


# -----------------------------------------------------------------------------
# One-time weight / index repacking (init-time only; true filter weights, no zeros).
# -----------------------------------------------------------------------------
def prepare_params(params, state_dim, kernel_size, stride):
    C, H, W = state_dim
    k, s = kernel_size, stride

    def out_sz(n):
        return (n - k) // s + 1

    oh1, ow1 = out_sz(H), out_sz(W)
    oh2, ow2 = out_sz(oh1), out_sz(ow1)
    oh3, ow3 = out_sz(oh2), out_sz(ow2)
    # TODO(synk): the kernel assumes the 3rd conv consumes its full input window
    # (1x1 output); other spatial configs would need the same tap machinery there.
    assert oh3 == 1 and ow3 == 1 and oh2 == k and ow2 == k, "unsupported conv geometry"

    hidden = params["audio_fc_w"].shape[1]
    attn = params["wa_att"].shape[1]
    # torch's `weights * feature` broadcast only works when attention_dim == hidden_dim.
    assert attn == hidden, "attention_dim must equal hidden_dim"
    action_dim = params["wa2"].shape[1]

    c1 = params["conv1_w"].shape[0]
    c2 = params["conv2_w"].shape[0]
    c3 = params["conv3_w"].shape[0]
    assert params["video_fc_w"].shape[0] == c3 * oh3 * ow3

    # Phase-permuted ordering of the conv1-output grid: indices grouped by residue
    # mod `s`, so every conv2 stride-s tap becomes a contiguous in-kernel slice.
    def phase_perm(n):
        return np.concatenate([np.arange(r, n, s) for r in range(s)])

    def tap_starts(n, n_out):
        starts = []
        for t in range(k):
            before = sum(len(range(rr, n, s)) for rr in range(t % s))
            start = before + t // s
            assert t // s + n_out <= len(range(t % s, n, s))
            starts.append(int(start))
        return tuple(starts)

    perm_r, perm_c = phase_perm(oh1), phase_perm(ow1)
    rstart, cstart = tap_starts(oh1, oh2), tap_starts(ow1, ow2)

    # conv1 im2col gather index (applied to the NCHW-flattened video in the wrapper):
    # rows enumerate conv1 output positions in the phase-permuted order; each row is
    # the (c, ky, kx)-ordered receptive field of that position.
    idx = np.empty((oh1 * ow1, C * k * k), np.int32)
    p = 0
    for i in perm_r:
        for j in perm_c:
            idx[p] = [c * H * W + (i * s + ky) * W + (j * s + kx)
                      for c in range(C) for ky in range(k) for kx in range(k)]
            p += 1

    f32 = np.float32
    w1 = np.asarray(params["conv1_w"], f32).reshape(c1, C * k * k).T / 255.0  # fold /255
    w2 = np.transpose(np.asarray(params["conv2_w"], f32), (2, 3, 1, 0)).reshape(k * k * c1, c2)
    w3 = np.transpose(np.asarray(params["conv3_w"], f32), (2, 3, 1, 0)).reshape(oh2 * ow2 * c2, c3)

    # Dueling heads fused into two matrices: [wa1 | wv1] and a block-diagonal
    # [[wa2, 0], [0, wv2]] so advantage and value come out of one matmul.
    wh1 = np.concatenate([np.asarray(params["wa1"], f32), np.asarray(params["wv1"], f32)], axis=1)
    bh1 = np.concatenate([np.asarray(params["ba1"], f32), np.asarray(params["bv1"], f32)], axis=1)
    wh2 = np.zeros((2 * hidden, action_dim + 1), f32)
    wh2[:hidden, :action_dim] = np.asarray(params["wa2"], f32)
    wh2[hidden:, action_dim:] = np.asarray(params["wv2"], f32)
    bh2 = np.concatenate([np.asarray(params["ba2"], f32), np.asarray(params["bv2"], f32)], axis=1)

    prep = {
        "gather_idx": jnp.asarray(idx),
        "w1": jnp.asarray(w1), "b1": jnp.asarray(params["conv1_b"], jnp.float32).reshape(1, c1),
        "w2": jnp.asarray(w2), "b2": jnp.asarray(params["conv2_b"], jnp.float32).reshape(1, c2),
        "w3": jnp.asarray(w3), "b3": jnp.asarray(params["conv3_b"], jnp.float32).reshape(1, c3),
        "wvfc": jnp.asarray(params["video_fc_w"]), "bvfc": jnp.asarray(params["video_fc_b"]),
        "wafc": jnp.asarray(params["audio_fc_w"]), "bafc": jnp.asarray(params["audio_fc_b"]),
        "waat": jnp.asarray(params["wa_att"]), "baat": jnp.asarray(params["ba_att"]),
        "wvat": jnp.asarray(params["wv_att"]), "bvat": jnp.asarray(params["bv_att"]),
        "wf": jnp.asarray(params["feature_w"]), "bf": jnp.asarray(params["feature_b"]),
        "wh1": jnp.asarray(wh1), "bh1": jnp.asarray(bh1),
        "wh2": jnp.asarray(wh2), "bh2": jnp.asarray(bh2),
    }
    cfg = dict(k=k, s=s, oh1=oh1, ow1=ow1, oh2=oh2, ow2=ow2,
               rstart=rstart, cstart=cstart, hidden=hidden, action_dim=action_dim)
    return prep, cfg


# -----------------------------------------------------------------------------
# Pure-JAX reference (correctness check only; explicit HIGHEST precision)
# -----------------------------------------------------------------------------
def reference_forward(p, audio, video_nchw, stride):
    hp = jax.lax.Precision.HIGHEST
    dot = functools.partial(jnp.dot, precision=hp)
    v = video_nchw.astype(jnp.float32) / 255.0

    def conv(x, w, b):
        y = lax.conv_general_dilated(
            x, w, (stride, stride), "VALID",
            dimension_numbers=("NCHW", "OIHW", "NCHW"), precision=hp)
        return jax.nn.relu(y + b.reshape(1, -1, 1, 1))

    x = conv(v, p["conv1_w"], p["conv1_b"])
    x = conv(x, p["conv2_w"], p["conv2_b"])
    x = conv(x, p["conv3_w"], p["conv3_b"])
    x = x.reshape(x.shape[0], -1)                        # torch nn.Flatten on NCHW
    vf = jax.nn.relu(dot(x, p["video_fc_w"]) + p["video_fc_b"])
    af = jax.nn.relu(dot(audio, p["audio_fc_w"]) + p["audio_fc_b"])

    def gate(f, w, b):
        return jax.nn.softmax(dot(f, w) + b, axis=-1) * f

    aa = gate(af, p["wa_att"], p["ba_att"])
    va = gate(vf, p["wv_att"], p["bv_att"])
    h = jax.nn.relu(dot(jnp.concatenate([aa, va], axis=1), p["feature_w"]) + p["feature_b"])
    adv = dot(jax.nn.relu(dot(h, p["wa1"]) + p["ba1"]), p["wa2"]) + p["ba2"]
    val = dot(jax.nn.relu(dot(h, p["wv1"]) + p["bv1"]), p["wv2"]) + p["bv2"]
    return val + adv - jnp.mean(adv, axis=1, keepdims=True)


# -----------------------------------------------------------------------------
# Deterministic synthetic parameters (same shapes as the torch module)
# -----------------------------------------------------------------------------
def init_params(key, in_ch, sound_dim, action_dim, k, hidden, attn, conv_out):
    keys = jax.random.split(key, 30)
    it = iter(keys)

    def w(shape, scale=0.05):
        return jax.random.normal(next(it), shape, jnp.float32) * scale

    p = {}
    p["conv1_w"], p["conv1_b"] = w((16, in_ch, k, k)), w((16,))
    p["conv2_w"], p["conv2_b"] = w((32, 16, k, k)), w((32,))
    p["conv3_w"], p["conv3_b"] = w((64, 32, k, k)), w((64,))
    p["video_fc_w"], p["video_fc_b"] = w((conv_out, hidden)), w((1, hidden))
    p["audio_fc_w"], p["audio_fc_b"] = w((sound_dim, hidden)), w((1, hidden))
    p["wa_att"], p["ba_att"] = w((hidden, attn)), w((1, attn))
    p["wv_att"], p["bv_att"] = w((hidden, attn)), w((1, attn))
    p["feature_w"], p["feature_b"] = w((2 * hidden, hidden)), w((1, hidden))
    p["wa1"], p["ba1"] = w((hidden, hidden)), w((1, hidden))
    p["wa2"], p["ba2"] = w((hidden, action_dim)), w((1, action_dim))
    p["wv1"], p["bv1"] = w((hidden, hidden)), w((1, hidden))
    p["wv2"], p["bv2"] = w((hidden, 1)), w((1, 1))
    return p


if __name__ == "__main__":
    B = 2
    state_dim = (4, 16, 16)      # (C, H, W) for the video input
    sound_dim = (8,)
    action_dim = 6
    kernel_size = 3
    stride = 2
    hidden_dim = 32
    attention_dim = 32           # must equal hidden_dim (torch broadcast requirement)

    def out_sz(n):
        return (n - kernel_size) // stride + 1

    h, w_ = state_dim[1], state_dim[2]
    for _ in range(3):
        h, w_ = out_sz(h), out_sz(w_)
    conv_out_size = 64 * h * w_

    root = jax.random.PRNGKey(0)
    kp, ka, kv = jax.random.split(root, 3)
    params = init_params(kp, state_dim[0], sound_dim[0], action_dim,
                         kernel_size, hidden_dim, attention_dim, conv_out_size)
    prep, cfg = prepare_params(params, state_dim, kernel_size, stride)
    forward = make_forward(cfg)

    audio = jax.random.normal(ka, (B, sound_dim[0]), jnp.float32)
    video = jax.random.uniform(kv, (B,) + state_dim, jnp.float32, 0.0, 255.0)

    q = jax.block_until_ready(forward(prep, audio, video))
    assert q.shape == (B, action_dim)

    # Tolerance covers MXU f32 pass-decomposition vs the HIGHEST-precision XLA
    # reference plus the approx-reciprocal (~1e-3 rel) in the softmax gates.
    q_ref = reference_forward(params, audio, video, stride)
    np.testing.assert_allclose(np.asarray(q), np.asarray(q_ref), rtol=1e-2, atol=1e-3)

    print("KERNEL_OK")
</pallas_src>

<mosaic_0001>
module attributes {stable_mosaic.version = 11 : i64} {
  func.func @kernel(%arg0: memref<2x8xf32, #tpu.memory_space<vmem>>, %arg1: memref<98x36xf32, #tpu.memory_space<vmem>>, %arg2: memref<36x16xf32, #tpu.memory_space<vmem>>, %arg3: memref<1x16xf32, #tpu.memory_space<vmem>>, %arg4: memref<144x32xf32, #tpu.memory_space<vmem>>, %arg5: memref<1x32xf32, #tpu.memory_space<vmem>>, %arg6: memref<288x64xf32, #tpu.memory_space<vmem>>, %arg7: memref<1x64xf32, #tpu.memory_space<vmem>>, %arg8: memref<64x32xf32, #tpu.memory_space<vmem>>, %arg9: memref<1x32xf32, #tpu.memory_space<vmem>>, %arg10: memref<8x32xf32, #tpu.memory_space<vmem>>, %arg11: memref<1x32xf32, #tpu.memory_space<vmem>>, %arg12: memref<32x32xf32, #tpu.memory_space<vmem>>, %arg13: memref<1x32xf32, #tpu.memory_space<vmem>>, %arg14: memref<32x32xf32, #tpu.memory_space<vmem>>, %arg15: memref<1x32xf32, #tpu.memory_space<vmem>>, %arg16: memref<64x32xf32, #tpu.memory_space<vmem>>, %arg17: memref<1x32xf32, #tpu.memory_space<vmem>>, %arg18: memref<32x64xf32, #tpu.memory_space<vmem>>, %arg19: memref<1x64xf32, #tpu.memory_space<vmem>>, %arg20: memref<64x7xf32, #tpu.memory_space<vmem>>, %arg21: memref<1x7xf32, #tpu.memory_space<vmem>>, %arg22: memref<2x6xf32, #tpu.memory_space<vmem>>) attributes {dimension_semantics = [], scalar_prefetch = 0 : i64, scratch_operands = 0 : i64, tpu.core_type = #tpu.core_type<tc>} {
    %c0 = arith.constant 0 : index
    %c0_0 = arith.constant 0 : index
    %0 = vector.load %arg1[%c0, %c0_0] : memref<98x36xf32, #tpu.memory_space<vmem>>, vector<98x36xf32>
    %c0_1 = arith.constant 0 : index
    %c0_2 = arith.constant 0 : index
    %1 = vector.load %arg2[%c0_1, %c0_2] : memref<36x16xf32, #tpu.memory_space<vmem>>, vector<36x16xf32>
    %cst = arith.constant dense<0.000000e+00> : vector<98x16xf32>
    %2 = tpu.matmul %0, %1, %cst {dimension_numbers = #tpu.dot_dimension_numbers<[1], [0], [0], [1], [0, 0, 1, 1], [], []>} : vector<98x36xf32>, vector<36x16xf32>, vector<98x16xf32> -> vector<98x16xf32>
    %c0_3 = arith.constant 0 : index
    %c0_4 = arith.constant 0 : index
    %3 = vector.load %arg3[%c0_3, %c0_4] : memref<1x16xf32, #tpu.memory_space<vmem>>, vector<1x16xf32>
    %4 = vector.broadcast %3 : vector<1x16xf32> to vector<98x16xf32>
    %5 = arith.addf %2, %4 : vector<98x16xf32>
    %cst_5 = arith.constant 0.000000e+00 : f32
    %6 = vector.broadcast %cst_5 : f32 to vector<98x16xf32>
    %7 = arith.maximumf %5, %6 : vector<98x16xf32>
    %8 = vector.extract_strided_slice %7 {offsets = [0, 0], sizes = [6, 16], strides = [1, 1]} : vector<98x16xf32> to vector<6x16xf32>
    %9 = vector.extract_strided_slice %7 {offsets = [8, 0], sizes = [6, 16], strides = [1, 1]} : vector<98x16xf32> to vector<6x16xf32>
    %10 = vector.extract_strided_slice %7 {offsets = [2, 0], sizes = [6, 16], strides = [1, 1]} : vector<98x16xf32> to vector<6x16xf32>
    %11 = vector.extract_strided_slice %7 {offsets = [56, 0], sizes = [6, 16], strides = [1, 1]} : vector<98x16xf32> to vector<6x16xf32>
    %12 = vector.extract_strided_slice %7 {offsets = [64, 0], sizes = [6, 16], strides = [1, 1]} : vector<98x16xf32> to vector<6x16xf32>
    %13 = vector.extract_strided_slice %7 {offsets = [58, 0], sizes = [6, 16], strides = [1, 1]} : vector<98x16xf32> to vector<6x16xf32>
    %14 = vector.extract_strided_slice %7 {offsets = [14, 0], sizes = [6, 16], strides = [1, 1]} : vector<98x16xf32> to vector<6x16xf32>
    %15 = vector.extract_strided_slice %7 {offsets = [22, 0], sizes = [6, 16], strides = [1, 1]} : vector<98x16xf32> to vector<6x16xf32>
    %16 = vector.extract_strided_slice %7 {offsets = [16, 0], sizes = [6, 16], strides = [1, 1]} : vector<98x16xf32> to vector<6x16xf32>
    %17 = tpu.concatenate %8, %9, %10, %11, %12, %13, %14, %15, %16 in 1 : vector<6x16xf32>, vector<6x16xf32>, vector<6x16xf32>, vector<6x16xf32>, vector<6x16xf32>, vector<6x16xf32>, vector<6x16xf32>, vector<6x16xf32>, vector<6x16xf32> -> vector<6x144xf32>
    %c0_6 = arith.constant 0 : index
    %c0_7 = arith.constant 0 : index
    %18 = vector.load %arg4[%c0_6, %c0_7] : memref<144x32xf32, #tpu.memory_space<vmem>>, vector<144x32xf32>
    %cst_8 = arith.constant dense<0.000000e+00> : vector<6x32xf32>
    %19 = tpu.matmul %17, %18, %cst_8 {dimension_numbers = #tpu.dot_dimension_numbers<[1], [0], [0], [1], [0, 0, 1, 1], [], []>} : vector<6x144xf32>, vector<144x32xf32>, vector<6x32xf32> -> vector<6x32xf32>
    %c0_9 = arith.constant 0 : index
    %c0_10 = arith.constant 0 : index
    %20 = vector.load %arg5[%c0_9, %c0_10] : memref<1x32xf32, #tpu.memory_space<vmem>>, vector<1x32xf32>
    %21 = vector.broadcast %20 : vector<1x32xf32> to vector<6x32xf32>
    %22 = arith.addf %19, %21 : vector<6x32xf32>
    %cst_11 = arith.constant 0.000000e+00 : f32
    %23 = vector.broadcast %cst_11 : f32 to vector<6x32xf32>
    %24 = arith.maximumf %22, %23 : vector<6x32xf32>
    %25 = vector.extract_strided_slice %7 {offsets = [14, 0], sizes = [6, 16], strides = [1, 1]} : vector<98x16xf32> to vector<6x16xf32>
    %26 = vector.extract_strided_slice %7 {offsets = [22, 0], sizes = [6, 16], strides = [1, 1]} : vector<98x16xf32> to vector<6x16xf32>
    %27 = vector.extract_strided_slice %7 {offsets = [16, 0], sizes = [6, 16], strides = [1, 1]} : vector<98x16xf32> to vector<6x16xf32>
    %28 = vector.extract_strided_slice %7 {offsets = [70, 0], sizes = [6, 16], strides = [1, 1]} : vector<98x16xf32> to vector<6x16xf32>
    %29 = vector.extract_strided_slice %7 {offsets = [78, 0], sizes = [6, 16], strides = [1, 1]} : vector<98x16xf32> to vector<6x16xf32>
    %30 = vector.extract_strided_slice %7 {offsets = [72, 0], sizes = [6, 16], strides = [1, 1]} : vector<98x16xf32> to vector<6x16xf32>
    %31 = vector.extract_strided_slice %7 {offsets = [28, 0], sizes = [6, 16], strides = [1, 1]} : vector<98x16xf32> to vector<6x16xf32>
    %32 = vector.extract_strided_slice %7 {offsets = [36, 0], sizes = [6, 16], strides = [1, 1]} : vector<98x16xf32> to vector<6x16xf32>
    %33 = vector.extract_strided_slice %7 {offsets = [30, 0], sizes = [6, 16], strides = [1, 1]} : vector<98x16xf32> to vector<6x16xf32>
    %34 = tpu.concatenate %25, %26, %27, %28, %29, %30, %31, %32, %33 in 1 : vector<6x16xf32>, vector<6x16xf32>, vector<6x16xf32>, vector<6x16xf32>, vector<6x16xf32>, vector<6x16xf32>, vector<6x16xf32>, vector<6x16xf32>, vector<6x16xf32> -> vector<6x144xf32>
    %c0_12 = arith.constant 0 : index
    %c0_13 = arith.constant 0 : index
    %35 = vector.load %arg4[%c0_12, %c0_13] : memref<144x32xf32, #tpu.memory_space<vmem>>, vector<144x32xf32>
    %cst_14 = arith.constant dense<0.000000e+00> : vector<6x32xf32>
    %36 = tpu.matmul %34, %35, %cst_14 {dimension_numbers = #tpu.dot_dimension_numbers<[1], [0], [0], [1], [0, 0, 1, 1], [], []>} : vector<6x144xf32>, vector<144x32xf32>, vector<6x32xf32> -> vector<6x32xf32>
    %c0_15 = arith.constant 0 : index
    %c0_16 = arith.constant 0 : index
    %37 = vector.load %arg5[%c0_15, %c0_16] : memref<1x32xf32, #tpu.memory_space<vmem>>, vector<1x32xf32>
    %38 = vector.broadcast %37 : vector<1x32xf32> to vector<6x32xf32>
    %39 = arith.addf %36, %38 : vector<6x32xf32>
    %cst_17 = arith.constant 0.000000e+00 : f32
    %40 = vector.broadcast %cst_17 : f32 to vector<6x32xf32>
    %41 = arith.maximumf %39, %40 : vector<6x32xf32>
    %42 = vector.extract_strided_slice %7 {offsets = [28, 0], sizes = [6, 16], strides = [1, 1]} : vector<98x16xf32> to vector<6x16xf32>
    %43 = vector.extract_strided_slice %7 {offsets = [36, 0], sizes = [6, 16], strides = [1, 1]} : vector<98x16xf32> to vector<6x16xf32>
    %44 = vector.extract_strided_slice %7 {offsets = [30, 0], sizes = [6, 16], strides = [1, 1]} : vector<98x16xf32> to vector<6x16xf32>
    %45 = vector.extract_strided_slice %7 {offsets = [84, 0], sizes = [6, 16], strides = [1, 1]} : vector<98x16xf32> to vector<6x16xf32>
    %46 = vector.extract_strided_slice %7 {offsets = [92, 0], sizes = [6, 16], strides = [1, 1]} : vector<98x16xf32> to vector<6x16xf32>
    %47 = vector.extract_strided_slice %7 {offsets = [86, 0], sizes = [6, 16], strides = [1, 1]} : vector<98x16xf32> to vector<6x16xf32>
    %48 = vector.extract_strided_slice %7 {offsets = [42, 0], sizes = [6, 16], strides = [1, 1]} : vector<98x16xf32> to vector<6x16xf32>
    %49 = vector.extract_strided_slice %7 {offsets = [50, 0], sizes = [6, 16], strides = [1, 1]} : vector<98x16xf32> to vector<6x16xf32>
    %50 = vector.extract_strided_slice %7 {offsets = [44, 0], sizes = [6, 16], strides = [1, 1]} : vector<98x16xf32> to vector<6x16xf32>
    %51 = tpu.concatenate %42, %43, %44, %45, %46, %47, %48, %49, %50 in 1 : vector<6x16xf32>, vector<6x16xf32>, vector<6x16xf32>, vector<6x16xf32>, vector<6x16xf32>, vector<6x16xf32>, vector<6x16xf32>, vector<6x16xf32>, vector<6x16xf32> -> vector<6x144xf32>
    %c0_18 = arith.constant 0 : index
    %c0_19 = arith.constant 0 : index
    %52 = vector.load %arg4[%c0_18, %c0_19] : memref<144x32xf32, #tpu.memory_space<vmem>>, vector<144x32xf32>
    %cst_20 = arith.constant dense<0.000000e+00> : vector<6x32xf32>
    %53 = tpu.matmul %51, %52, %cst_20 {dimension_numbers = #tpu.dot_dimension_numbers<[1], [0], [0], [1], [0, 0, 1, 1], [], []>} : vector<6x144xf32>, vector<144x32xf32>, vector<6x32xf32> -> vector<6x32xf32>
    %c0_21 = arith.constant 0 : index
    %c0_22 = arith.constant 0 : index
    %54 = vector.load %arg5[%c0_21, %c0_22] : memref<1x32xf32, #tpu.memory_space<vmem>>, vector<1x32xf32>
    %55 = vector.broadcast %54 : vector<1x32xf32> to vector<6x32xf32>
    %56 = arith.addf %53, %55 : vector<6x32xf32>
    %cst_23 = arith.constant 0.000000e+00 : f32
    %57 = vector.broadcast %cst_23 : f32 to vector<6x32xf32>
    %58 = arith.maximumf %56, %57 : vector<6x32xf32>
    %59 = vector.extract_strided_slice %24 {offsets = [0, 0], sizes = [2, 32], strides = [1, 1]} : vector<6x32xf32> to vector<2x32xf32>
    %60 = vector.extract_strided_slice %24 {offsets = [2, 0], sizes = [2, 32], strides = [1, 1]} : vector<6x32xf32> to vector<2x32xf32>
    %61 = vector.extract_strided_slice %24 {offsets = [4, 0], sizes = [2, 32], strides = [1, 1]} : vector<6x32xf32> to vector<2x32xf32>
    %62 = vector.extract_strided_slice %41 {offsets = [0, 0], sizes = [2, 32], strides = [1, 1]} : vector<6x32xf32> to vector<2x32xf32>
    %63 = vector.extract_strided_slice %41 {offsets = [2, 0], sizes = [2, 32], strides = [1, 1]} : vector<6x32xf32> to vector<2x32xf32>
    %64 = vector.extract_strided_slice %41 {offsets = [4, 0], sizes = [2, 32], strides = [1, 1]} : vector<6x32xf32> to vector<2x32xf32>
    %65 = vector.extract_strided_slice %58 {offsets = [0, 0], sizes = [2, 32], strides = [1, 1]} : vector<6x32xf32> to vector<2x32xf32>
    %66 = vector.extract_strided_slice %58 {offsets = [2, 0], sizes = [2, 32], strides = [1, 1]} : vector<6x32xf32> to vector<2x32xf32>
    %67 = vector.extract_strided_slice %58 {offsets = [4, 0], sizes = [2, 32], strides = [1, 1]} : vector<6x32xf32> to vector<2x32xf32>
    %68 = tpu.concatenate %59, %60, %61, %62, %63, %64, %65, %66, %67 in 1 : vector<2x32xf32>, vector<2x32xf32>, vector<2x32xf32>, vector<2x32xf32>, vector<2x32xf32>, vector<2x32xf32>, vector<2x32xf32>, vector<2x32xf32>, vector<2x32xf32> -> vector<2x288xf32>
    %c0_24 = arith.constant 0 : index
    %c0_25 = arith.constant 0 : index
    %69 = vector.load %arg6[%c0_24, %c0_25] : memref<288x64xf32, #tpu.memory_space<vmem>>, vector<288x64xf32>
    %cst_26 = arith.constant dense<0.000000e+00> : vector<2x64xf32>
    %70 = tpu.matmul %68, %69, %cst_26 {dimension_numbers = #tpu.dot_dimension_numbers<[1], [0], [0], [1], [0, 0, 1, 1], [], []>} : vector<2x288xf32>, vector<288x64xf32>, vector<2x64xf32> -> vector<2x64xf32>
    %c0_27 = arith.constant 0 : index
    %c0_28 = arith.constant 0 : index
    %71 = vector.load %arg7[%c0_27, %c0_28] : memref<1x64xf32, #tpu.memory_space<vmem>>, vector<1x64xf32>
    %72 = vector.broadcast %71 : vector<1x64xf32> to vector<2x64xf32>
    %73 = arith.addf %70, %72 : vector<2x64xf32>
    %cst_29 = arith.constant 0.000000e+00 : f32
    %74 = vector.broadcast %cst_29 : f32 to vector<2x64xf32>
    %75 = arith.maximumf %73, %74 : vector<2x64xf32>
    %c0_30 = arith.constant 0 : index
    %c0_31 = arith.constant 0 : index
    %76 = vector.load %arg8[%c0_30, %c0_31] : memref<64x32xf32, #tpu.memory_space<vmem>>, vector<64x32xf32>
    %cst_32 = arith.constant dense<0.000000e+00> : vector<2x32xf32>
    %77 = tpu.matmul %75, %76, %cst_32 {dimension_numbers = #tpu.dot_dimension_numbers<[1], [0], [0], [1], [0, 0, 1, 1], [], []>} : vector<2x64xf32>, vector<64x32xf32>, vector<2x32xf32> -> vector<2x32xf32>
    %c0_33 = arith.constant 0 : index
    %c0_34 = arith.constant 0 : index
    %78 = vector.load %arg9[%c0_33, %c0_34] : memref<1x32xf32, #tpu.memory_space<vmem>>, vector<1x32xf32>
    %79 = vector.broadcast %78 : vector<1x32xf32> to vector<2x32xf32>
    %80 = arith.addf %77, %79 : vector<2x32xf32>
    %cst_35 = arith.constant 0.000000e+00 : f32
    %81 = vector.broadcast %cst_35 : f32 to vector<2x32xf32>
    %82 = arith.maximumf %80, %81 : vector<2x32xf32>
    %c0_36 = arith.constant 0 : index
    %c0_37 = arith.constant 0 : index
    %83 = vector.load %arg0[%c0_36, %c0_37] : memref<2x8xf32, #tpu.memory_space<vmem>>, vector<2x8xf32>
    %c0_38 = arith.constant 0 : index
    %c0_39 = arith.constant 0 : index
    %84 = vector.load %arg10[%c0_38, %c0_39] : memref<8x32xf32, #tpu.memory_space<vmem>>, vector<8x32xf32>
    %cst_40 = arith.constant dense<0.000000e+00> : vector<2x32xf32>
    %85 = tpu.matmul %83, %84, %cst_40 {dimension_numbers = #tpu.dot_dimension_numbers<[1], [0], [0], [1], [0, 0, 1, 1], [], []>} : vector<2x8xf32>, vector<8x32xf32>, vector<2x32xf32> -> vector<2x32xf32>
    %c0_41 = arith.constant 0 : index
    %c0_42 = arith.constant 0 : index
    %86 = vector.load %arg11[%c0_41, %c0_42] : memref<1x32xf32, #tpu.memory_space<vmem>>, vector<1x32xf32>
    %87 = vector.broadcast %86 : vector<1x32xf32> to vector<2x32xf32>
    %88 = arith.addf %85, %87 : vector<2x32xf32>
    %cst_43 = arith.constant 0.000000e+00 : f32
    %89 = vector.broadcast %cst_43 : f32 to vector<2x32xf32>
    %90 = arith.maximumf %88, %89 : vector<2x32xf32>
    %c0_44 = arith.constant 0 : index
    %c0_45 = arith.constant 0 : index
    %91 = vector.load %arg12[%c0_44, %c0_45] : memref<32x32xf32, #tpu.memory_space<vmem>>, vector<32x32xf32>
    %cst_46 = arith.constant dense<0.000000e+00> : vector<2x32xf32>
    %92 = tpu.matmul %90, %91, %cst_46 {dimension_numbers = #tpu.dot_dimension_numbers<[1], [0], [0], [1], [0, 0, 1, 1], [], []>} : vector<2x32xf32>, vector<32x32xf32>, vector<2x32xf32> -> vector<2x32xf32>
    %c0_47 = arith.constant 0 : index
    %c0_48 = arith.constant 0 : index
    %93 = vector.load %arg13[%c0_47, %c0_48] : memref<1x32xf32, #tpu.memory_space<vmem>>, vector<1x32xf32>
    %94 = vector.broadcast %93 : vector<1x32xf32> to vector<2x32xf32>
    %95 = arith.addf %92, %94 : vector<2x32xf32>
    %cst_49 = arith.constant dense<0xFF800000> : vector<2xf32>
    %96 = vector.multi_reduction <maximumf>, %95, %cst_49 [1] : vector<2x32xf32> to vector<2xf32>
    %97 = vector.shape_cast %96 : vector<2xf32> to vector<2x1xf32>
    %98 = vector.broadcast %97 : vector<2x1xf32> to vector<2x32xf32>
    %99 = arith.subf %95, %98 : vector<2x32xf32>
    %100 = math.exp %99 : vector<2x32xf32>
    %cst_50 = arith.constant dense<0.000000e+00> : vector<2xf32>
    %101 = vector.multi_reduction <add>, %100, %cst_50 [1] : vector<2x32xf32> to vector<2xf32>
    %102 = vector.shape_cast %101 : vector<2xf32> to vector<2x1xf32>
    %103 = tpu.reciprocal %102 {approx = true} : vector<2x1xf32> -> vector<2x1xf32>
    %104 = vector.broadcast %103 : vector<2x1xf32> to vector<2x32xf32>
    %105 = arith.mulf %100, %104 : vector<2x32xf32>
    %106 = arith.mulf %105, %90 : vector<2x32xf32>
    %c0_51 = arith.constant 0 : index
    %c0_52 = arith.constant 0 : index
    %107 = vector.load %arg14[%c0_51, %c0_52] : memref<32x32xf32, #tpu.memory_space<vmem>>, vector<32x32xf32>
    %cst_53 = arith.constant dense<0.000000e+00> : vector<2x32xf32>
    %108 = tpu.matmul %82, %107, %cst_53 {dimension_numbers = #tpu.dot_dimension_numbers<[1], [0], [0], [1], [0, 0, 1, 1], [], []>} : vector<2x32xf32>, vector<32x32xf32>, vector<2x32xf32> -> vector<2x32xf32>
    %c0_54 = arith.constant 0 : index
    %c0_55 = arith.constant 0 : index
    %109 = vector.load %arg15[%c0_54, %c0_55] : memref<1x32xf32, #tpu.memory_space<vmem>>, vector<1x32xf32>
    %110 = vector.broadcast %109 : vector<1x32xf32> to vector<2x32xf32>
    %111 = arith.addf %108, %110 : vector<2x32xf32>
    %cst_56 = arith.constant dense<0xFF800000> : vector<2xf32>
    %112 = vector.multi_reduction <maximumf>, %111, %cst_56 [1] : vector<2x32xf32> to vector<2xf32>
    %113 = vector.shape_cast %112 : vector<2xf32> to vector<2x1xf32>
    %114 = vector.broadcast %113 : vector<2x1xf32> to vector<2x32xf32>
    %115 = arith.subf %111, %114 : vector<2x32xf32>
    %116 = math.exp %115 : vector<2x32xf32>
    %cst_57 = arith.constant dense<0.000000e+00> : vector<2xf32>
    %117 = vector.multi_reduction <add>, %116, %cst_57 [1] : vector<2x32xf32> to vector<2xf32>
    %118 = vector.shape_cast %117 : vector<2xf32> to vector<2x1xf32>
    %119 = tpu.reciprocal %118 {approx = true} : vector<2x1xf32> -> vector<2x1xf32>
    %120 = vector.broadcast %119 : vector<2x1xf32> to vector<2x32xf32>
    %121 = arith.mulf %116, %120 : vector<2x32xf32>
    %122 = arith.mulf %121, %82 : vector<2x32xf32>
    %123 = tpu.concatenate %106, %122 in 1 : vector<2x32xf32>, vector<2x32xf32> -> vector<2x64xf32>
    %c0_58 = arith.constant 0 : index
    %c0_59 = arith.constant 0 : index
    %124 = vector.load %arg16[%c0_58, %c0_59] : memref<64x32xf32, #tpu.memory_space<vmem>>, vector<64x32xf32>
    %cst_60 = arith.constant dense<0.000000e+00> : vector<2x32xf32>
    %125 = tpu.matmul %123, %124, %cst_60 {dimension_numbers = #tpu.dot_dimension_numbers<[1], [0], [0], [1], [0, 0, 1, 1], [], []>} : vector<2x64xf32>, vector<64x32xf32>, vector<2x32xf32> -> vector<2x32xf32>
    %c0_61 = arith.constant 0 : index
    %c0_62 = arith.constant 0 : index
    %126 = vector.load %arg17[%c0_61, %c0_62] : memref<1x32xf32, #tpu.memory_space<vmem>>, vector<1x32xf32>
    %127 = vector.broadcast %126 : vector<1x32xf32> to vector<2x32xf32>
    %128 = arith.addf %125, %127 : vector<2x32xf32>
    %cst_63 = arith.constant 0.000000e+00 : f32
    %129 = vector.broadcast %cst_63 : f32 to vector<2x32xf32>
    %130 = arith.maximumf %128, %129 : vector<2x32xf32>
    %c0_64 = arith.constant 0 : index
    %c0_65 = arith.constant 0 : index
    %131 = vector.load %arg18[%c0_64, %c0_65] : memref<32x64xf32, #tpu.memory_space<vmem>>, vector<32x64xf32>
    %cst_66 = arith.constant dense<0.000000e+00> : vector<2x64xf32>
    %132 = tpu.matmul %130, %131, %cst_66 {dimension_numbers = #tpu.dot_dimension_numbers<[1], [0], [0], [1], [0, 0, 1, 1], [], []>} : vector<2x32xf32>, vector<32x64xf32>, vector<2x64xf32> -> vector<2x64xf32>
    %c0_67 = arith.constant 0 : index
    %c0_68 = arith.constant 0 : index
    %133 = vector.load %arg19[%c0_67, %c0_68] : memref<1x64xf32, #tpu.memory_space<vmem>>, vector<1x64xf32>
    %134 = vector.broadcast %133 : vector<1x64xf32> to vector<2x64xf32>
    %135 = arith.addf %132, %134 : vector<2x64xf32>
    %cst_69 = arith.constant 0.000000e+00 : f32
    %136 = vector.broadcast %cst_69 : f32 to vector<2x64xf32>
    %137 = arith.maximumf %135, %136 : vector<2x64xf32>
    %c0_70 = arith.constant 0 : index
    %c0_71 = arith.constant 0 : index
    %138 = vector.load %arg20[%c0_70, %c0_71] : memref<64x7xf32, #tpu.memory_space<vmem>>, vector<64x7xf32>
    %cst_72 = arith.constant dense<0.000000e+00> : vector<2x7xf32>
    %139 = tpu.matmul %137, %138, %cst_72 {dimension_numbers = #tpu.dot_dimension_numbers<[1], [0], [0], [1], [0, 0, 1, 1], [], []>} : vector<2x64xf32>, vector<64x7xf32>, vector<2x7xf32> -> vector<2x7xf32>
    %c0_73 = arith.constant 0 : index
    %c0_74 = arith.constant 0 : index
    %140 = vector.load %arg21[%c0_73, %c0_74] : memref<1x7xf32, #tpu.memory_space<vmem>>, vector<1x7xf32>
    %141 = vector.broadcast %140 : vector<1x7xf32> to vector<2x7xf32>
    %142 = arith.addf %139, %141 : vector<2x7xf32>
    %143 = vector.extract_strided_slice %142 {offsets = [0, 0], sizes = [2, 6], strides = [1, 1]} : vector<2x7xf32> to vector<2x6xf32>
    %144 = vector.extract_strided_slice %142 {offsets = [0, 6], sizes = [2, 1], strides = [1, 1]} : vector<2x7xf32> to vector<2x1xf32>
    %145 = vector.broadcast %144 : vector<2x1xf32> to vector<2x6xf32>
    %146 = arith.addf %145, %143 : vector<2x6xf32>
    %cst_75 = arith.constant dense<0.000000e+00> : vector<2xf32>
    %147 = vector.multi_reduction <add>, %143, %cst_75 [1] : vector<2x6xf32> to vector<2xf32>
    %148 = vector.shape_cast %147 : vector<2xf32> to vector<2x1xf32>
    %cst_76 = arith.constant 6.000000e+00 : f32
    %149 = vector.broadcast %cst_76 : f32 to vector<2x1xf32>
    %150 = arith.divf %148, %149 : vector<2x1xf32>
    %151 = vector.broadcast %150 : vector<2x1xf32> to vector<2x6xf32>
    %152 = arith.subf %146, %151 : vector<2x6xf32>
    %c0_77 = arith.constant 0 : index
    %c0_78 = arith.constant 0 : index
    %153 = vector.load %arg22[%c0_77, %c0_78] : memref<2x6xf32, #tpu.memory_space<vmem>>, vector<2x6xf32>
    tpu.vector_store %arg22[%c0_77, %c0_78], %152 {strides = array<i32>} : memref<2x6xf32, #tpu.memory_space<vmem>>, vector<2x6xf32>,
    return
  }
}

</mosaic_0001>

<llo_original>
// kernel: forward.1
$region0: #{forward.1}
  #allocation0 [shape = 'u32[]', space=smem, size = 0x4, offset = 0x4, fixed_abs, tag = 'smem constant byte address 0x4 - core index']
  #allocation1 [shape = 'u32[72,128]{1,0:T(1,128)}', space=vmem, size = 0x9000, scoped, tag = 'internal scratch']
  %s0 = inlined_call_operand.vmem [shape: f32[2,8], index: 0, kind: input, shape index: {}]
  %s1 = inlined_call_operand.vmem [shape: f32[98,36], index: 1, kind: input, shape index: {}]
  %s2 = inlined_call_operand.vmem [shape: f32[36,16], index: 2, kind: input, shape index: {}]
  %s3 = inlined_call_operand.vmem [shape: f32[1,16], index: 3, kind: input, shape index: {}]
  %s4 = inlined_call_operand.vmem [shape: f32[144,32], index: 4, kind: input, shape index: {}]
  %s5 = inlined_call_operand.vmem [shape: f32[1,32], index: 5, kind: input, shape index: {}]
  %s6 = inlined_call_operand.vmem [shape: f32[288,64], index: 6, kind: input, shape index: {}]
  %s7 = inlined_call_operand.vmem [shape: f32[1,64], index: 7, kind: input, shape index: {}]
  %s8 = inlined_call_operand.vmem [shape: f32[64,32], index: 8, kind: input, shape index: {}]
  %s9 = inlined_call_operand.vmem [shape: f32[1,32], index: 9, kind: input, shape index: {}]
  %s10 = inlined_call_operand.vmem [shape: f32[8,32], index: 10, kind: input, shape index: {}]
  %s11 = inlined_call_operand.vmem [shape: f32[1,32], index: 11, kind: input, shape index: {}]
  %s12 = inlined_call_operand.vmem [shape: f32[32,32], index: 12, kind: input, shape index: {}]
  %s13 = inlined_call_operand.vmem [shape: f32[1,32], index: 13, kind: input, shape index: {}]
  %s14 = inlined_call_operand.vmem [shape: f32[32,32], index: 14, kind: input, shape index: {}]
  %s15 = inlined_call_operand.vmem [shape: f32[1,32], index: 15, kind: input, shape index: {}]
  %s16 = inlined_call_operand.vmem [shape: f32[64,32], index: 16, kind: input, shape index: {}]
  %s17 = inlined_call_operand.vmem [shape: f32[1,32], index: 17, kind: input, shape index: {}]
  %s18 = inlined_call_operand.vmem [shape: f32[32,64], index: 18, kind: input, shape index: {}]
  %s19 = inlined_call_operand.vmem [shape: f32[1,64], index: 19, kind: input, shape index: {}]
  %s20 = inlined_call_operand.vmem [shape: f32[64,7], index: 20, kind: input, shape index: {}]
  %s21 = inlined_call_operand.vmem [shape: f32[1,7], index: 21, kind: input, shape index: {}]
  %s22 = inlined_call_operand.hbm [shape: f32[2,6], index: 22, kind: output, shape index: {}]
  %s23 = sld [smem:[#allocation0]]
  $region98: #{forward.1} parent=0
    _
  %s25 = ssub.s32 1, %s23
  %s26 = scalar_select 0, %s25, %s23
  $region1: #{forward.1} parent=0
    #allocation2 [shape = 'u8[1024]{0}', space=vmem, size = 0x400, scoped, tag = 'output window, operand 0, single buffered']
    #allocation3 [shape = 's32[1]{0}', space=sflag, size = 0x4, scoped, tag = 'scoped memory for forward.1']
    %27 = vsyncpa [#allocation3], 0
    // Predicated region
    $region2: #{forward.1} parent=1 // pred_check
      _
    $region3: #{forward.1} parent=1 // pred_check_branch
      %29 = sbr.rel (0) target = $region5
    $region4: #{forward.1} parent=1 // pred_region
      _
    $region5: #{forward.1} parent=1 // pred_fallthru
      _
    // Predicated region
    $region6: #{forward.1} parent=1 // pred_check
      _
    $region7: #{forward.1} parent=1 // pred_check_branch
      %31 = sbr.rel (0) target = $region9
    $region8: #{forward.1} parent=1 // pred_region
      _
    $region9: #{forward.1} parent=1 // pred_fallthru
      _
    // Predicated region
    $region10: #{forward.1} parent=1 // pred_check
      _
    $region11: #{forward.1} parent=1 // pred_check_branch
      %33 = sbr.rel (0) target = $region13
    $region12: #{forward.1} parent=1 // pred_region
      _
    $region13: #{forward.1} parent=1 // pred_fallthru
      _
    // Predicated region
    $region14: #{forward.1} parent=1 // pred_check
      _
    $region15: #{forward.1} parent=1 // pred_check_branch
      %35 = sbr.rel (0) target = $region17
    $region16: #{forward.1} parent=1 // pred_region
      _
    $region17: #{forward.1} parent=1 // pred_fallthru
      _
    // Predicated region
    $region18: #{forward.1} parent=1 // pred_check
      _
    $region19: #{forward.1} parent=1 // pred_check_branch
      %37 = sbr.rel (0) target = $region21
    $region20: #{forward.1} parent=1 // pred_region
      _
    $region21: #{forward.1} parent=1 // pred_fallthru
      _
    // Predicated region
    $region22: #{forward.1} parent=1 // pred_check
      _
    $region23: #{forward.1} parent=1 // pred_check_branch
      %39 = sbr.rel (0) target = $region25
    $region24: #{forward.1} parent=1 // pred_region
      _
    $region25: #{forward.1} parent=1 // pred_fallthru
      _
    // Predicated region
    $region26: #{forward.1} parent=1 // pred_check
      _
    $region27: #{forward.1} parent=1 // pred_check_branch
      %41 = sbr.rel (0) target = $region29
    $region28: #{forward.1} parent=1 // pred_region
      _
    $region29: #{forward.1} parent=1 // pred_fallthru
      _
    // Predicated region
    $region30: #{forward.1} parent=1 // pred_check
      _
    $region31: #{forward.1} parent=1 // pred_check_branch
      %43 = sbr.rel (0) target = $region33
    $region32: #{forward.1} parent=1 // pred_region
      _
    $region33: #{forward.1} parent=1 // pred_fallthru
      _
    // Predicated region
    $region34: #{forward.1} parent=1 // pred_check
      _
    $region35: #{forward.1} parent=1 // pred_check_branch
      %45 = sbr.rel (0) target = $region37
    $region36: #{forward.1} parent=1 // pred_region
      _
    $region37: #{forward.1} parent=1 // pred_fallthru
      _
    // Predicated region
    $region38: #{forward.1} parent=1 // pred_check
      _
    $region39: #{forward.1} parent=1 // pred_check_branch
      %47 = sbr.rel (0) target = $region41
    $region40: #{forward.1} parent=1 // pred_region
      _
    $region41: #{forward.1} parent=1 // pred_fallthru
      _
    // Predicated region
    $region42: #{forward.1} parent=1 // pred_check
      _
    $region43: #{forward.1} parent=1 // pred_check_branch
      %49 = sbr.rel (0) target = $region45
    $region44: #{forward.1} parent=1 // pred_region
      _
    $region45: #{forward.1} parent=1 // pred_fallthru
      _
    // Predicated region
    $region46: #{forward.1} parent=1 // pred_check
      _
    $region47: #{forward.1} parent=1 // pred_check_branch
      %51 = sbr.rel (0) target = $region49
    $region48: #{forward.1} parent=1 // pred_region
      _
    $region49: #{forward.1} parent=1 // pred_fallthru
      _
    // Predicated region
    $region50: #{forward.1} parent=1 // pred_check
      _
    $region51: #{forward.1} parent=1 // pred_check_branch
      %53 = sbr.rel (0) target = $region53
    $region52: #{forward.1} parent=1 // pred_region
      _
    $region53: #{forward.1} parent=1 // pred_fallthru
      _
    // Predicated region
    $region54: #{forward.1} parent=1 // pred_check
      _
    $region55: #{forward.1} parent=1 // pred_check_branch
      %55 = sbr.rel (0) target = $region57
    $region56: #{forward.1} parent=1 // pred_region
      _
    $region57: #{forward.1} parent=1 // pred_fallthru
      _
    // Predicated region
    $region58: #{forward.1} parent=1 // pred_check
      _
    $region59: #{forward.1} parent=1 // pred_check_branch
      %57 = sbr.rel (0) target = $region61
    $region60: #{forward.1} parent=1 // pred_region
      _
    $region61: #{forward.1} parent=1 // pred_fallthru
      _
    // Predicated region
    $region62: #{forward.1} parent=1 // pred_check
      _
    $region63: #{forward.1} parent=1 // pred_check_branch
      %59 = sbr.rel (0) target = $region65
    $region64: #{forward.1} parent=1 // pred_region
      _
    $region65: #{forward.1} parent=1 // pred_fallthru
      _
    // Predicated region
    $region66: #{forward.1} parent=1 // pred_check
      _
    $region67: #{forward.1} parent=1 // pred_check_branch
      %61 = sbr.rel (0) target = $region69
    $region68: #{forward.1} parent=1 // pred_region
      _
    $region69: #{forward.1} parent=1 // pred_fallthru
      _
    // Predicated region
    $region70: #{forward.1} parent=1 // pred_check
      _
    $region71: #{forward.1} parent=1 // pred_check_branch
      %63 = sbr.rel (0) target = $region73
    $region72: #{forward.1} parent=1 // pred_region
      _
    $region73: #{forward.1} parent=1 // pred_fallthru
      _
    // Predicated region
    $region74: #{forward.1} parent=1 // pred_check
      _
    $region75: #{forward.1} parent=1 // pred_check_branch
      %65 = sbr.rel (0) target = $region77
    $region76: #{forward.1} parent=1 // pred_region
      _
    $region77: #{forward.1} parent=1 // pred_fallthru
      _
    // Predicated region
    $region78: #{forward.1} parent=1 // pred_check
      _
    $region79: #{forward.1} parent=1 // pred_check_branch
      %67 = sbr.rel (0) target = $region81
    $region80: #{forward.1} parent=1 // pred_region
      _
    $region81: #{forward.1} parent=1 // pred_fallthru
      _
    // Predicated region
    $region82: #{forward.1} parent=1 // pred_check
      _
    $region83: #{forward.1} parent=1 // pred_check_branch
      %69 = sbr.rel (0) target = $region85
    $region84: #{forward.1} parent=1 // pred_region
      _
    $region85: #{forward.1} parent=1 // pred_fallthru
      _
    // Predicated region
    $region86: #{forward.1} parent=1 // pred_check
      _
    $region87: #{forward.1} parent=1 // pred_check_branch
      %71 = sbr.rel (0) target = $region89
    $region88: #{forward.1} parent=1 // pred_region
      _
    $region89: #{forward.1} parent=1 // pred_fallthru
      _
    %v72 = vld [vmem:[%s1] sm:$0xff]
    %v73 = vld [vmem:[%s1 + $0x8] sm:$0xff]
    %v74 = vld [vmem:[%s1 + $0x10] sm:$0xff]
    %v75 = vld [vmem:[%s1 + $0x18] sm:$0xff]
    %v76 = vld [vmem:[%s1 + $0x20] sm:$0xff]
    %v77 = vld [vmem:[%s1 + $0x28] sm:$0xff]
    %v78 = vld [vmem:[%s1 + $0x30] sm:$0xff]
    %v79 = vld [vmem:[%s1 + $0x38] sm:$0xff]
    %v80 = vld [vmem:[%s1 + $0x40] sm:$0xff]
    %v81 = vld [vmem:[%s1 + $0x48] sm:$0xff]
    %v82 = vld [vmem:[%s1 + $0x50] sm:$0xff]
    %v83 = vld [vmem:[%s1 + $0x58] sm:$0xff]
    %v84 = vld [vmem:[%s1 + $0x60] sm:$0x3]
    %v85 = vld [vmem:[%s2] sm:$0xff]
    %v86 = vld [vmem:[%s2 + $0x8] sm:$0xff]
    %v87 = vld [vmem:[%s2 + $0x10] sm:$0xff]
    %v88 = vld [vmem:[%s2 + $0x18] sm:$0xff]
    %v89 = vld [vmem:[%s2 + $0x20] sm:$0xf]
    %v90 = vld [vmem:[%s3] sm:$0x1]
    %v92 = vperm.slane %v90, 0
    %vm94 = vcmask 293888
    %v96 = vsel %vm94, %v72, 0
    %v99 = vsel %vm94, %v73, 0
    %v102 = vsel %vm94, %v74, 0
    %v105 = vsel %vm94, %v75, 0
    %v108 = vsel %vm94, %v76, 0
    %v111 = vsel %vm94, %v77, 0
    %v114 = vsel %vm94, %v78, 0
    %v117 = vsel %vm94, %v79, 0
    %v120 = vsel %vm94, %v80, 0
    %v123 = vsel %vm94, %v81, 0
    %v126 = vsel %vm94, %v82, 0
    %v129 = vsel %vm94, %v83, 0
    %v132 = vsel %vm94, %v84, 0
    %vm134 = vcmask 1043456
    %v136 = vsel %vm134, %v89, 0
    %138 = vmatpush.msra.mxu0 0.0
    %139 = vmatpush.msra.mxu0 0.0
    %140 = vmatpush.msra.mxu0 0.0
    %141 = vmatpush.msra.mxu0 0.0
    %142 = vmatpush.msra.mxu0 0.0
    %143 = vmatpush.msra.mxu0 0.0
    %144 = vmatpush.msra.mxu0 0.0
    %145 = vmatpush.msra.mxu0 0.0
    %146 = vmatpush.msra.mxu0 0.0
    %147 = vmatpush.msra.mxu0 0.0
    %148 = vmatpush.msra.mxu0 0.0
    %149 = vmatpush.msra.mxu0 %v136
    %150 = vmatpush.msra.mxu0 %v88
    %151 = vmatpush.msra.mxu0 %v87
    %152 = vmatpush.msra.mxu0 %v86
    %153 = vmatpush.msra.mxu0 %v85
    %154 = vmatmul.f32.gmra.mxu0 %v96
    %v155 = vpop.f32.mrf.mxu0
    %v156 = vadd.f32 %v92, %v155
    %157 = vmatmul.f32.gmra.mxu0 %v99
    %v158 = vpop.f32.mrf.mxu0
    %v159 = vadd.f32 %v92, %v158
    %160 = vmatmul.f32.gmra.mxu0 %v102
    %v161 = vpop.f32.mrf.mxu0
    %v162 = vadd.f32 %v92, %v161
    %163 = vmatmul.f32.gmra.mxu0 %v105
    %v164 = vpop.f32.mrf.mxu0
    %v165 = vadd.f32 %v92, %v164
    %166 = vmatmul.f32.gmra.mxu0 %v108
    %v167 = vpop.f32.mrf.mxu0
    %v168 = vadd.f32 %v92, %v167
    %169 = vmatmul.f32.gmra.mxu0 %v111
    %v170 = vpop.f32.mrf.mxu0
    %v171 = vadd.f32 %v92, %v170
    %172 = vmatmul.f32.gmra.mxu0 %v114
    %v173 = vpop.f32.mrf.mxu0
    %v174 = vadd.f32 %v92, %v173
    %175 = vmatmul.f32.gmra.mxu0 %v117
    %v176 = vpop.f32.mrf.mxu0
    %v177 = vadd.f32 %v92, %v176
    %178 = vmatmul.f32.gmra.mxu0 %v120
    %v179 = vpop.f32.mrf.mxu0
    %v180 = vadd.f32 %v92, %v179
    %181 = vmatmul.f32.gmra.mxu0 %v123
    %v182 = vpop.f32.mrf.mxu0
    %v183 = vadd.f32 %v92, %v182
    %184 = vmatmul.f32.gmra.mxu0 %v126
    %v185 = vpop.f32.mrf.mxu0
    %v186 = vadd.f32 %v92, %v185
    %187 = vmatmul.f32.gmra.mxu0 %v129
    %v188 = vpop.f32.mrf.mxu0
    %v189 = vadd.f32 %v92, %v188
    %190 = vmatmul.f32.gmra.mxu0 %v132
    %v191 = vpop.f32.mrf.mxu0
    %v192 = vadd.f32 %v92, %v191
    %193 = vdwg.mxu0
    %v194 = vmax.f32 %v156, 0.0
    %v195 = vmax.f32 %v159, 0.0
    %v196 = vmax.f32 %v162, 0.0
    %v197 = vmax.f32 %v165, 0.0
    %v198 = vmax.f32 %v168, 0.0
    %v199 = vmax.f32 %v171, 0.0
    %v200 = vmax.f32 %v174, 0.0
    %v201 = vmax.f32 %v177, 0.0
    %v202 = vmax.f32 %v180, 0.0
    %v203 = vmax.f32 %v183, 0.0
    %v204 = vmax.f32 %v186, 0.0
    %v205 = vmax.f32 %v189, 0.0
    %v206 = vmax.f32 %v192, 0.0
    %208 = vrot.lane.b32.xlu0 %v195, 16
    %v209 = vpop.permute.xlu0 %208
    %v212 = vrot.slane %v194, 2
    %213 = vrot.lane.b32.xlu0 %v212, 32
    %v214 = vpop.permute.xlu0 %213
    %217 = vrot.lane.b32.xlu0 %v201, 48
    %v218 = vpop.permute.xlu0 %217
    %221 = vrot.lane.b32.xlu0 %v202, 64
    %v222 = vpop.permute.xlu0 %221
    %v224 = vrot.slane %v201, 2
    %225 = vrot.lane.b32.xlu0 %v224, 80
    %v226 = vpop.permute.xlu0 %225
    %vm229 = vcmask 1041408
    %v230 = vrot.slane %v195, 6
    %v231 = vrot.slane %v196, 6
    %v232 = vsel %vm229, %v230, %v231
    %233 = vrot.lane.b32.xlu0 %v232, 96
    %v234 = vpop.permute.xlu0 %233
    %v237 = vrot.slane %v197, 6
    %v238 = vsel %vm229, %v231, %v237
    %239 = vrot.lane.b32.xlu0 %v238, 112
    %v240 = vpop.permute.xlu0 %239
    %vm242 = vcmask 130048
    %v243 = vsel %vm242, %v194, %v209
    %vm244 = vcmask 261120
    %v245 = vsel %vm244, %v243, %v214
    %vm246 = vcmask 392192
    %v247 = vsel %vm246, %v245, %v218
    %vm248 = vcmask 523264
    %v249 = vsel %vm248, %v247, %v222
    %vm250 = vcmask 654336
    %v251 = vsel %vm250, %v249, %v226
    %vm252 = vcmask 785408
    %v253 = vsel %vm252, %v251, %v234
    %vm254 = vcmask 916480
    %v255 = vsel %vm254, %v253, %v240
    %v256 = vld [vmem:[%s4] sm:$0xff]
    %v257 = vld [vmem:[%s4 + $0x8] sm:$0xff]
    %v258 = vld [vmem:[%s4 + $0x10] sm:$0xff]
    %v259 = vld [vmem:[%s4 + $0x18] sm:$0xff]
    %v260 = vld [vmem:[%s4 + $0x20] sm:$0xff]
    %v261 = vld [vmem:[%s4 + $0x28] sm:$0xff]
    %v262 = vld [vmem:[%s4 + $0x30] sm:$0xff]
    %v263 = vld [vmem:[%s4 + $0x38] sm:$0xff]
    %v264 = vld [vmem:[%s4 + $0x40] sm:$0xff]
    %v265 = vld [vmem:[%s4 + $0x48] sm:$0xff]
    %v266 = vld [vmem:[%s4 + $0x50] sm:$0xff]
    %v267 = vld [vmem:[%s4 + $0x58] sm:$0xff]
    %v268 = vld [vmem:[%s4 + $0x60] sm:$0xff]
    %v269 = vld [vmem:[%s4 + $0x68] sm:$0xff]
    %v270 = vld [vmem:[%s4 + $0x70] sm:$0xff]
    %v271 = vld [vmem:[%s4 + $0x78] sm:$0xff]
    %v272 = vld [vmem:[%s4 + $0x80] sm:$0xff]
    %v273 = vld [vmem:[%s4 + $0x88] sm:$0xff]
    %v274 = vld [vmem:[%s5] sm:$0x1]
    %v276 = vperm.slane %v274, 0
    %v278 = vsel %vm242, %v196, 0
    %280 = vmatpush.msra.mxu0 %v271
    %281 = vmatpush.msra.mxu0 %v270
    %282 = vmatpush.msra.mxu0 %v269
    %283 = vmatpush.msra.mxu0 %v268
    %284 = vmatpush.msra.mxu0 %v267
    %285 = vmatpush.msra.mxu0 %v266
    %286 = vmatpush.msra.mxu0 %v265
    %287 = vmatpush.msra.mxu0 %v264
    %288 = vmatpush.msra.mxu0 %v263
    %289 = vmatpush.msra.mxu0 %v262
    %290 = vmatpush.msra.mxu0 %v261
    %291 = vmatpush.msra.mxu0 %v260
    %292 = vmatpush.msra.mxu0 %v259
    %293 = vmatpush.msra.mxu0 %v258
    %294 = vmatpush.msra.mxu0 %v257
    %295 = vmatpush.msra.mxu0 %v256
    %296 = vmatmul.f32.gmra.mxu0 %v255
    %v297 = vpop.f32.mrf.mxu0
    %v298 = vadd.f32 %v276, %v297
    %299 = vdwg.mxu0
    %300 = vmatpush.msra.mxu0 0.0
    %301 = vmatpush.msra.mxu0 0.0
    %302 = vmatpush.msra.mxu0 0.0
    %303 = vmatpush.msra.mxu0 0.0
    %304 = vmatpush.msra.mxu0 0.0
    %305 = vmatpush.msra.mxu0 0.0
    %306 = vmatpush.msra.mxu0 0.0
    %307 = vmatpush.msra.mxu0 0.0
    %308 = vmatpush.msra.mxu0 0.0
    %309 = vmatpush.msra.mxu0 0.0
    %310 = vmatpush.msra.mxu0 0.0
    %311 = vmatpush.msra.mxu0 0.0
    %312 = vmatpush.msra.mxu0 0.0
    %313 = vmatpush.msra.mxu0 0.0
    %314 = vmatpush.msra.mxu0 %v273
    %315 = vmatpush.msra.mxu0 %v272
    %316 = vmatmul.f32.gmra.mxu0 %v278
    %v317 = vpop.f32.mrf.mxu0
    %v318 = vadd.f32 %v298, %v317
    %319 = vdwg.mxu0
    %v320 = vmax.f32 %v318, 0.0
    %321 = vrot.lane.b32.xlu0 %v196, 16
    %v322 = vpop.permute.xlu0 %321
    %323 = vrot.lane.b32.xlu0 %v197, 16
    %v324 = vpop.permute.xlu0 %323
    %v327 = vrot.slane %v196, 2
    %328 = vrot.lane.b32.xlu0 %v327, 32
    %v329 = vpop.permute.xlu0 %328
    %332 = vrot.lane.b32.xlu0 %v202, 48
    %v333 = vpop.permute.xlu0 %332
    %334 = vrot.lane.b32.xlu0 %v203, 48
    %v335 = vpop.permute.xlu0 %334
    %339 = vrot.lane.b32.xlu0 %v203, 64
    %v340 = vpop.permute.xlu0 %339
    %341 = vrot.lane.b32.xlu0 %v204, 64
    %v342 = vpop.permute.xlu0 %341
    %v345 = vrot.slane %v203, 2
    %346 = vrot.lane.b32.xlu0 %v345, 80
    %v347 = vpop.permute.xlu0 %346
    %v350 = vrot.slane %v198, 6
    %v351 = vsel %vm229, %v237, %v350
    %352 = vrot.lane.b32.xlu0 %v237, 96
    %v353 = vpop.permute.xlu0 %352
    %354 = vrot.lane.b32.xlu0 %v351, 96
    %v355 = vpop.permute.xlu0 %354
    %v359 = vrot.slane %v199, 6
    %v360 = vsel %vm229, %v350, %v359
    %361 = vrot.lane.b32.xlu0 %v350, 112
    %v362 = vpop.permute.xlu0 %361
    %363 = vrot.lane.b32.xlu0 %v360, 112
    %v364 = vpop.permute.xlu0 %363
    %v367 = vsel %vm242, %v195, %v322
    %v368 = vsel %vm242, %v196, %v324
    %v369 = vsel %vm244, %v367, %v329
    %v370 = vsel %vm244, %v368, %v329
    %v371 = vsel %vm246, %v369, %v333
    %v372 = vsel %vm246, %v370, %v335
    %v373 = vsel %vm248, %v371, %v340
    %v374 = vsel %vm248, %v372, %v342
    %v375 = vsel %vm250, %v373, %v347
    %v376 = vsel %vm250, %v374, %v347
    %v377 = vsel %vm252, %v375, %v353
    %v378 = vsel %vm252, %v376, %v355
    %v379 = vsel %vm254, %v377, %v362
    %v380 = vsel %vm254, %v378, %v364
    %v383 = vrot.slane %v379, 6
    %v384 = vrot.slane %v380, 6
    %v385 = vsel %vm229, %v383, %v384
    %v387 = vsel %vm242, %v351, 0
    %389 = vmatpush.msra.mxu0 %v271
    %390 = vmatpush.msra.mxu0 %v270
    %391 = vmatpush.msra.mxu0 %v269
    %392 = vmatpush.msra.mxu0 %v268
    %393 = vmatpush.msra.mxu0 %v267
    %394 = vmatpush.msra.mxu0 %v266
    %395 = vmatpush.msra.mxu0 %v265
    %396 = vmatpush.msra.mxu0 %v264
    %397 = vmatpush.msra.mxu0 %v263
    %398 = vmatpush.msra.mxu0 %v262
    %399 = vmatpush.msra.mxu0 %v261
    %400 = vmatpush.msra.mxu0 %v260
    %401 = vmatpush.msra.mxu0 %v259
    %402 = vmatpush.msra.mxu0 %v258
    %403 = vmatpush.msra.mxu0 %v257
    %404 = vmatpush.msra.mxu0 %v256
    %405 = vmatmul.f32.gmra.mxu0 %v385
    %v406 = vpop.f32.mrf.mxu0
    %v407 = vadd.f32 %v276, %v406
    %408 = vdwg.mxu0
    %409 = vmatpush.msra.mxu0 0.0
    %410 = vmatpush.msra.mxu0 0.0
    %411 = vmatpush.msra.mxu0 0.0
    %412 = vmatpush.msra.mxu0 0.0
    %413 = vmatpush.msra.mxu0 0.0
    %414 = vmatpush.msra.mxu0 0.0
    %415 = vmatpush.msra.mxu0 0.0
    %416 = vmatpush.msra.mxu0 0.0
    %417 = vmatpush.msra.mxu0 0.0
    %418 = vmatpush.msra.mxu0 0.0
    %419 = vmatpush.msra.mxu0 0.0
    %420 = vmatpush.msra.mxu0 0.0
    %421 = vmatpush.msra.mxu0 0.0
    %422 = vmatpush.msra.mxu0 0.0
    %423 = vmatpush.msra.mxu0 %v273
    %424 = vmatpush.msra.mxu0 %v272
    %425 = vmatmul.f32.gmra.mxu0 %v387
    %v426 = vpop.f32.mrf.mxu0
    %v427 = vadd.f32 %v407, %v426
    %428 = vdwg.mxu0
    %v429 = vmax.f32 %v427, 0.0
    %430 = vrot.lane.b32.xlu0 %v198, 16
    %v431 = vpop.permute.xlu0 %430
    %432 = vrot.lane.b32.xlu0 %v199, 16
    %v433 = vpop.permute.xlu0 %432
    %vm436 = vcmask 1045504
    %v437 = vrot.slane %v197, 2
    %v438 = vrot.slane %v198, 2
    %v439 = vsel %vm436, %v437, %v438
    %440 = vrot.lane.b32.xlu0 %v439, 32
    %v441 = vpop.permute.xlu0 %440
    %442 = vrot.lane.b32.xlu0 %v438, 32
    %v443 = vpop.permute.xlu0 %442
    %447 = vrot.lane.b32.xlu0 %v204, 48
    %v448 = vpop.permute.xlu0 %447
    %449 = vrot.lane.b32.xlu0 %v205, 48
    %v450 = vpop.permute.xlu0 %449
    %454 = vrot.lane.b32.xlu0 %v205, 64
    %v455 = vpop.permute.xlu0 %454
    %456 = vrot.lane.b32.xlu0 %v206, 64
    %v457 = vpop.permute.xlu0 %456
    %v460 = vrot.slane %v204, 2
    %v461 = vrot.slane %v205, 2
    %v462 = vsel %vm436, %v460, %v461
    %463 = vrot.lane.b32.xlu0 %v462, 80
    %v464 = vpop.permute.xlu0 %463
    %465 = vrot.lane.b32.xlu0 %v461, 80
    %v466 = vpop.permute.xlu0 %465
    %469 = vrot.lane.b32.xlu0 %v359, 96
    %v470 = vpop.permute.xlu0 %469
    %v473 = vrot.slane %v200, 6
    %474 = vrot.lane.b32.xlu0 %v473, 112
    %v475 = vpop.permute.xlu0 %474
    %v477 = vsel %vm242, %v197, %v431
    %v478 = vsel %vm242, %v198, %v433
    %v479 = vsel %vm244, %v477, %v441
    %v480 = vsel %vm244, %v478, %v443
    %v481 = vsel %vm246, %v479, %v448
    %v482 = vsel %vm246, %v480, %v450
    %v483 = vsel %vm248, %v481, %v455
    %v484 = vsel %vm248, %v482, %v457
    %v485 = vsel %vm250, %v483, %v464
    %v486 = vsel %vm250, %v484, %v466
    %v487 = vsel %vm252, %v485, %v470
    %v488 = vsel %vm252, %v486, %v470
    %v489 = vsel %vm254, %v487, %v475
    %v490 = vsel %vm254, %v488, %v475
    %v493 = vrot.slane %v489, 4
    %v494 = vrot.slane %v490, 4
    %v495 = vsel %vm134, %v493, %v494
    %v496 = vrot.slane %v199, 4
    %v497 = vrot.slane %v200, 4
    %v498 = vsel %vm134, %v496, %v497
    %v500 = vsel %vm242, %v498, 0
    %502 = vmatpush.msra.mxu0 %v271
    %503 = vmatpush.msra.mxu0 %v270
    %504 = vmatpush.msra.mxu0 %v269
    %505 = vmatpush.msra.mxu0 %v268
    %506 = vmatpush.msra.mxu0 %v267
    %507 = vmatpush.msra.mxu0 %v266
    %508 = vmatpush.msra.mxu0 %v265
    %509 = vmatpush.msra.mxu0 %v264
    %510 = vmatpush.msra.mxu0 %v263
    %511 = vmatpush.msra.mxu0 %v262
    %512 = vmatpush.msra.mxu0 %v261
    %513 = vmatpush.msra.mxu0 %v260
    %514 = vmatpush.msra.mxu0 %v259
    %515 = vmatpush.msra.mxu0 %v258
    %516 = vmatpush.msra.mxu0 %v257
    %517 = vmatpush.msra.mxu0 %v256
    %518 = vmatmul.f32.gmra.mxu0 %v495
    %v519 = vpop.f32.mrf.mxu0
    %v520 = vadd.f32 %v276, %v519
    %521 = vdwg.mxu0
    %522 = vmatpush.msra.mxu0 0.0
    %523 = vmatpush.msra.mxu0 0.0
    %524 = vmatpush.msra.mxu0 0.0
    %525 = vmatpush.msra.mxu0 0.0
    %526 = vmatpush.msra.mxu0 0.0
    %527 = vmatpush.msra.mxu0 0.0
    %528 = vmatpush.msra.mxu0 0.0
    %529 = vmatpush.msra.mxu0 0.0
    %530 = vmatpush.msra.mxu0 0.0
    %531 = vmatpush.msra.mxu0 0.0
    %532 = vmatpush.msra.mxu0 0.0
    %533 = vmatpush.msra.mxu0 0.0
    %534 = vmatpush.msra.mxu0 0.0
    %535 = vmatpush.msra.mxu0 0.0
    %536 = vmatpush.msra.mxu0 %v273
    %537 = vmatpush.msra.mxu0 %v272
    %538 = vmatmul.f32.gmra.mxu0 %v500
    %v539 = vpop.f32.mrf.mxu0
    %v540 = vadd.f32 %v520, %v539
    %541 = vdwg.mxu0
    %v542 = vmax.f32 %v540, 0.0
    %v544 = vrot.slane %v320, 2
    %545 = vrot.lane.b32.xlu0 %v544, 32
    %v546 = vpop.permute.xlu0 %545
    %v548 = vrot.slane %v320, 4
    %549 = vrot.lane.b32.xlu0 %v548, 64
    %v550 = vpop.permute.xlu0 %549
    %553 = vrot.lane.b32.xlu0 %v429, 96
    %v554 = vpop.permute.xlu0 %553
    %v556 = vrot.slane %v429, 2
    %v558 = vrot.slane %v429, 4
    %559 = vrot.lane.b32.xlu0 %v558, 32
    %v560 = vpop.permute.xlu0 %559
    %563 = vrot.lane.b32.xlu0 %v542, 64
    %v564 = vpop.permute.xlu0 %563
    %v566 = vrot.slane %v542, 2
    %567 = vrot.lane.b32.xlu0 %v566, 96
    %v568 = vpop.permute.xlu0 %567
    %v570 = vrot.slane %v542, 4
    %v571 = vsel %vm244, %v320, %v546
    %v572 = vsel %vm248, %v571, %v550
    %v573 = vsel %vm252, %v572, %v554
    %v574 = vsel %vm244, %v556, %v560
    %v575 = vsel %vm248, %v574, %v564
    %v576 = vsel %vm252, %v575, %v568
    %v577 = vld [vmem:[%s6] sm:$0xff]
    %v578 = vld [vmem:[%s6 + $0x8] sm:$0xff]
    %v579 = vld [vmem:[%s6 + $0x10] sm:$0xff]
    %v580 = vld [vmem:[%s6 + $0x18] sm:$0xff]
    %v581 = vld [vmem:[%s6 + $0x20] sm:$0xff]
    %v582 = vld [vmem:[%s6 + $0x28] sm:$0xff]
    %v583 = vld [vmem:[%s6 + $0x30] sm:$0xff]
    %v584 = vld [vmem:[%s6 + $0x38] sm:$0xff]
    %v585 = vld [vmem:[%s6 + $0x40] sm:$0xff]
    %v586 = vld [vmem:[%s6 + $0x48] sm:$0xff]
    %v587 = vld [vmem:[%s6 + $0x50] sm:$0xff]
    %v588 = vld [vmem:[%s6 + $0x58] sm:$0xff]
    %v589 = vld [vmem:[%s6 + $0x60] sm:$0xff]
    %v590 = vld [vmem:[%s6 + $0x68] sm:$0xff]
    %v591 = vld [vmem:[%s6 + $0x70] sm:$0xff]
    %v592 = vld [vmem:[%s6 + $0x78] sm:$0xff]
    %v593 = vld [vmem:[%s6 + $0x80] sm:$0xff]
    %v594 = vld [vmem:[%s6 + $0x88] sm:$0xff]
    %v595 = vld [vmem:[%s6 + $0x90] sm:$0xff]
    %v596 = vld [vmem:[%s6 + $0x98] sm:$0xff]
    %v597 = vld [vmem:[%s6 + $0xa0] sm:$0xff]
    %v598 = vld [vmem:[%s6 + $0xa8] sm:$0xff]
    %v599 = vld [vmem:[%s6 + $0xb0] sm:$0xff]
    %v600 = vld [vmem:[%s6 + $0xb8] sm:$0xff]
    %v601 = vld [vmem:[%s6 + $0xc0] sm:$0xff]
    %v602 = vld [vmem:[%s6 + $0xc8] sm:$0xff]
    %v603 = vld [vmem:[%s6 + $0xd0] sm:$0xff]
    %v604 = vld [vmem:[%s6 + $0xd8] sm:$0xff]
    %v605 = vld [vmem:[%s6 + $0xe0] sm:$0xff]
    %v606 = vld [vmem:[%s6 + $0xe8] sm:$0xff]
    %v607 = vld [vmem:[%s6 + $0xf0] sm:$0xff]
    %v608 = vld [vmem:[%s6 + $0xf8] sm:$0xff]
    %v609 = vld [vmem:[%s6 + $0x100] sm:$0xff]
    %v610 = vld [vmem:[%s6 + $0x108] sm:$0xff]
    %v611 = vld [vmem:[%s6 + $0x110] sm:$0xff]
    %v612 = vld [vmem:[%s6 + $0x118] sm:$0xff]
    %v613 = vld [vmem:[%s7] sm:$0x1]
    %v615 = vperm.slane %v613, 0
    %v617 = vsel %vm244, %v570, 0
    %619 = vmatpush.msra.mxu0 %v592
    %620 = vmatpush.msra.mxu0 %v591
    %621 = vmatpush.msra.mxu0 %v590
    %622 = vmatpush.msra.mxu0 %v589
    %623 = vmatpush.msra.mxu0 %v588
    %624 = vmatpush.msra.mxu0 %v587
    %625 = vmatpush.msra.mxu0 %v586
    %626 = vmatpush.msra.mxu0 %v585
    %627 = vmatpush.msra.mxu0 %v584
    %628 = vmatpush.msra.mxu0 %v583
    %629 = vmatpush.msra.mxu0 %v582
    %630 = vmatpush.msra.mxu0 %v581
    %631 = vmatpush.msra.mxu0 %v580
    %632 = vmatpush.msra.mxu0 %v579
    %633 = vmatpush.msra.mxu0 %v578
    %634 = vmatpush.msra.mxu0 %v577
    %635 = vmatmul.f32.gmra.mxu0 %v573
    %v636 = vpop.f32.mrf.mxu0
    %v637 = vadd.f32 %v615, %v636
    %638 = vdwg.mxu0
    %639 = vmatpush.msra.mxu0 %v608
    %640 = vmatpush.msra.mxu0 %v607
    %641 = vmatpush.msra.mxu0 %v606
    %642 = vmatpush.msra.mxu0 %v605
    %643 = vmatpush.msra.mxu0 %v604
    %644 = vmatpush.msra.mxu0 %v603
    %645 = vmatpush.msra.mxu0 %v602
    %646 = vmatpush.msra.mxu0 %v601
    %647 = vmatpush.msra.mxu0 %v600
    %648 = vmatpush.msra.mxu0 %v599
    %649 = vmatpush.msra.mxu0 %v598
    %650 = vmatpush.msra.mxu0 %v597
    %651 = vmatpush.msra.mxu0 %v596
    %652 = vmatpush.msra.mxu0 %v595
    %653 = vmatpush.msra.mxu0 %v594
    %654 = vmatpush.msra.mxu0 %v593
    %655 = vmatmul.f32.gmra.mxu0 %v576
    %v656 = vpop.f32.mrf.mxu0
    %v657 = vadd.f32 %v637, %v656
    %658 = vdwg.mxu0
    %659 = vmatpush.msra.mxu0 0.0
    %660 = vmatpush.msra.mxu0 0.0
    %661 = vmatpush.msra.mxu0 0.0
    %662 = vmatpush.msra.mxu0 0.0
    %663 = vmatpush.msra.mxu0 0.0
    %664 = vmatpush.msra.mxu0 0.0
    %665 = vmatpush.msra.mxu0 0.0
    %666 = vmatpush.msra.mxu0 0.0
    %667 = vmatpush.msra.mxu0 0.0
    %668 = vmatpush.msra.mxu0 0.0
    %669 = vmatpush.msra.mxu0 0.0
    %670 = vmatpush.msra.mxu0 0.0
    %671 = vmatpush.msra.mxu0 %v612
    %672 = vmatpush.msra.mxu0 %v611
    %673 = vmatpush.msra.mxu0 %v610
    %674 = vmatpush.msra.mxu0 %v609
    %675 = vmatmul.f32.gmra.mxu0 %v617
    %v676 = vpop.f32.mrf.mxu0
    %v677 = vadd.f32 %v657, %v676
    %678 = vdwg.mxu0
    %v679 = vmax.f32 %v677, 0.0
    %v680 = vld [vmem:[%s8] sm:$0xff]
    %v681 = vld [vmem:[%s8 + $0x8] sm:$0xff]
    %v682 = vld [vmem:[%s8 + $0x10] sm:$0xff]
    %v683 = vld [vmem:[%s8 + $0x18] sm:$0xff]
    %v684 = vld [vmem:[%s8 + $0x20] sm:$0xff]
    %v685 = vld [vmem:[%s8 + $0x28] sm:$0xff]
    %v686 = vld [vmem:[%s8 + $0x30] sm:$0xff]
    %v687 = vld [vmem:[%s8 + $0x38] sm:$0xff]
    %v688 = vld [vmem:[%s9] sm:$0x1]
    %v690 = vperm.slane %v688, 0
    %v693 = vsel %vm248, %v679, 0
    %695 = vmatpush.msra.mxu0 0.0
    %696 = vmatpush.msra.mxu0 0.0
    %697 = vmatpush.msra.mxu0 0.0
    %698 = vmatpush.msra.mxu0 0.0
    %699 = vmatpush.msra.mxu0 0.0
    %700 = vmatpush.msra.mxu0 0.0
    %701 = vmatpush.msra.mxu0 0.0
    %702 = vmatpush.msra.mxu0 0.0
    %703 = vmatpush.msra.mxu0 %v687
    %704 = vmatpush.msra.mxu0 %v686
    %705 = vmatpush.msra.mxu0 %v685
    %706 = vmatpush.msra.mxu0 %v684
    %707 = vmatpush.msra.mxu0 %v683
    %708 = vmatpush.msra.mxu0 %v682
    %709 = vmatpush.msra.mxu0 %v681
    %710 = vmatpush.msra.mxu0 %v680
    %711 = vmatmul.f32.gmra.mxu0 %v693
    %v712 = vpop.f32.mrf.mxu0
    %v713 = vadd.f32 %v690, %v712
    %714 = vdwg.mxu0
    %v715 = vmax.f32 %v713, 0.0
    %v716 = vld [vmem:[%s0] sm:$0x3]
    %v717 = vld [vmem:[%s10] sm:$0xff]
    %v718 = vld [vmem:[%s11] sm:$0x1]
    %v720 = vperm.slane %v718, 0
    %vm722 = vcmask 64512
    %v724 = vsel %vm722, %v716, 0
    %726 = vmatpush.msra.mxu0 0.0
    %727 = vmatpush.msra.mxu0 0.0
    %728 = vmatpush.msra.mxu0 0.0
    %729 = vmatpush.msra.mxu0 0.0
    %730 = vmatpush.msra.mxu0 0.0
    %731 = vmatpush.msra.mxu0 0.0
    %732 = vmatpush.msra.mxu0 0.0
    %733 = vmatpush.msra.mxu0 0.0
    %734 = vmatpush.msra.mxu0 0.0
    %735 = vmatpush.msra.mxu0 0.0
    %736 = vmatpush.msra.mxu0 0.0
    %737 = vmatpush.msra.mxu0 0.0
    %738 = vmatpush.msra.mxu0 0.0
    %739 = vmatpush.msra.mxu0 0.0
    %740 = vmatpush.msra.mxu0 0.0
    %741 = vmatpush.msra.mxu0 %v717
    %742 = vmatmul.f32.gmra.mxu0 %v724
    %v743 = vpop.f32.mrf.mxu0
    %v744 = vadd.f32 %v720, %v743
    %745 = vdwg.mxu0
    %v746 = vmax.f32 %v744, 0.0
    %v747 = vld [vmem:[%s12] sm:$0xff]
    %v748 = vld [vmem:[%s12 + $0x8] sm:$0xff]
    %v749 = vld [vmem:[%s12 + $0x10] sm:$0xff]
    %v750 = vld [vmem:[%s12 + $0x18] sm:$0xff]
    %v751 = vld [vmem:[%s13] sm:$0x1]
    %v753 = vperm.slane %v751, 0
    %v756 = vsel %vm244, %v746, 0
    %758 = vmatpush.msra.mxu0 0.0
    %759 = vmatpush.msra.mxu0 0.0
    %760 = vmatpush.msra.mxu0 0.0
    %761 = vmatpush.msra.mxu0 0.0
    %762 = vmatpush.msra.mxu0 0.0
    %763 = vmatpush.msra.mxu0 0.0
    %764 = vmatpush.msra.mxu0 0.0
    %765 = vmatpush.msra.mxu0 0.0
    %766 = vmatpush.msra.mxu0 0.0
    %767 = vmatpush.msra.mxu0 0.0
    %768 = vmatpush.msra.mxu0 0.0
    %769 = vmatpush.msra.mxu0 0.0
    %770 = vmatpush.msra.mxu0 %v750
    %771 = vmatpush.msra.mxu0 %v749
    %772 = vmatpush.msra.mxu0 %v748
    %773 = vmatpush.msra.mxu0 %v747
    %774 = vmatmul.f32.gmra.mxu0 %v756
    %v775 = vpop.f32.mrf.mxu0
    %v776 = vadd.f32 %v753, %v775
    %777 = vdwg.mxu0
    %vm778 = vcmask 254976
    %v779 = vsel %vm778, %v776, -inf
    %780 = vmax.xlane.f32.xlu0 %v779
    %v781 = vpop.xlane.xlu0 %780
    %v782 = vsub.f32 %v776, %v781
    %v783 = vmul.f32 %v782, 1.442695
    %v784 = vpow.pop %v783
    %v785 = vsel %vm778, %v784, 0.0
    %786 = vadd.xlane.f32.xlu0 %v785
    %v787 = vpop.xlane.xlu0 %786
    %v788 = vrcp.pop %v787
    %v789 = vmul.f32 %v784, %v788
    %v790 = vmul.f32 %v789, %v746
    %v791 = vld [vmem:[%s14] sm:$0xff]
    %v792 = vld [vmem:[%s14 + $0x8] sm:$0xff]
    %v793 = vld [vmem:[%s14 + $0x10] sm:$0xff]
    %v794 = vld [vmem:[%s14 + $0x18] sm:$0xff]
    %v795 = vld [vmem:[%s15] sm:$0x1]
    %v797 = vperm.slane %v795, 0
    %v800 = vsel %vm244, %v715, 0
    %802 = vmatpush.msra.mxu0 0.0
    %803 = vmatpush.msra.mxu0 0.0
    %804 = vmatpush.msra.mxu0 0.0
    %805 = vmatpush.msra.mxu0 0.0
    %806 = vmatpush.msra.mxu0 0.0
    %807 = vmatpush.msra.mxu0 0.0
    %808 = vmatpush.msra.mxu0 0.0
    %809 = vmatpush.msra.mxu0 0.0
    %810 = vmatpush.msra.mxu0 0.0
    %811 = vmatpush.msra.mxu0 0.0
    %812 = vmatpush.msra.mxu0 0.0
    %813 = vmatpush.msra.mxu0 0.0
    %814 = vmatpush.msra.mxu0 %v794
    %815 = vmatpush.msra.mxu0 %v793
    %816 = vmatpush.msra.mxu0 %v792
    %817 = vmatpush.msra.mxu0 %v791
    %818 = vmatmul.f32.gmra.mxu0 %v800
    %v819 = vpop.f32.mrf.mxu0
    %v820 = vadd.f32 %v797, %v819
    %821 = vdwg.mxu0
    %v822 = vsel %vm778, %v820, -inf
    %823 = vmax.xlane.f32.xlu0 %v822
    %v824 = vpop.xlane.xlu0 %823
    %v825 = vsub.f32 %v820, %v824
    %v826 = vmul.f32 %v825, 1.442695
    %v827 = vpow.pop %v826
    %v828 = vsel %vm778, %v827, 0.0
    %829 = vadd.xlane.f32.xlu0 %v828
    %v830 = vpop.xlane.xlu0 %829
    %v831 = vrcp.pop %v830
    %v832 = vmul.f32 %v827, %v831
    %v833 = vmul.f32 %v832, %v715
    %835 = vrot.lane.b32.xlu0 %v833, 32
    %v836 = vpop.permute.xlu0 %835
    %v838 = vsel %vm244, %v790, %v836
    %v839 = vld [vmem:[%s16] sm:$0xff]
    %v840 = vld [vmem:[%s16 + $0x8] sm:$0xff]
    %v841 = vld [vmem:[%s16 + $0x10] sm:$0xff]
    %v842 = vld [vmem:[%s16 + $0x18] sm:$0xff]
    %v843 = vld [vmem:[%s16 + $0x20] sm:$0xff]
    %v844 = vld [vmem:[%s16 + $0x28] sm:$0xff]
    %v845 = vld [vmem:[%s16 + $0x30] sm:$0xff]
    %v846 = vld [vmem:[%s16 + $0x38] sm:$0xff]
    %v847 = vld [vmem:[%s17] sm:$0x1]
    %v849 = vperm.slane %v847, 0
    %v852 = vsel %vm248, %v838, 0
    %854 = vmatpush.msra.mxu0 0.0
    %855 = vmatpush.msra.mxu0 0.0
    %856 = vmatpush.msra.mxu0 0.0
    %857 = vmatpush.msra.mxu0 0.0
    %858 = vmatpush.msra.mxu0 0.0
    %859 = vmatpush.msra.mxu0 0.0
    %860 = vmatpush.msra.mxu0 0.0
    %861 = vmatpush.msra.mxu0 0.0
    %862 = vmatpush.msra.mxu0 %v846
    %863 = vmatpush.msra.mxu0 %v845
    %864 = vmatpush.msra.mxu0 %v844
    %865 = vmatpush.msra.mxu0 %v843
    %866 = vmatpush.msra.mxu0 %v842
    %867 = vmatpush.msra.mxu0 %v841
    %868 = vmatpush.msra.mxu0 %v840
    %869 = vmatpush.msra.mxu0 %v839
    %870 = vmatmul.f32.gmra.mxu0 %v852
    %v871 = vpop.f32.mrf.mxu0
    %v872 = vadd.f32 %v849, %v871
    %873 = vdwg.mxu0
    %v874 = vmax.f32 %v872, 0.0
    %v875 = vld [vmem:[%s18] sm:$0xff]
    %v876 = vld [vmem:[%s18 + $0x8] sm:$0xff]
    %v877 = vld [vmem:[%s18 + $0x10] sm:$0xff]
    %v878 = vld [vmem:[%s18 + $0x18] sm:$0xff]
    %v879 = vld [vmem:[%s19] sm:$0x1]
    %v881 = vperm.slane %v879, 0
    %v884 = vsel %vm244, %v874, 0
    %886 = vmatpush.msra.mxu0 0.0
    %887 = vmatpush.msra.mxu0 0.0
    %888 = vmatpush.msra.mxu0 0.0
    %889 = vmatpush.msra.mxu0 0.0
    %890 = vmatpush.msra.mxu0 0.0
    %891 = vmatpush.msra.mxu0 0.0
    %892 = vmatpush.msra.mxu0 0.0
    %893 = vmatpush.msra.mxu0 0.0
    %894 = vmatpush.msra.mxu0 0.0
    %895 = vmatpush.msra.mxu0 0.0
    %896 = vmatpush.msra.mxu0 0.0
    %897 = vmatpush.msra.mxu0 0.0
    %898 = vmatpush.msra.mxu0 %v878
    %899 = vmatpush.msra.mxu0 %v877
    %900 = vmatpush.msra.mxu0 %v876
    %901 = vmatpush.msra.mxu0 %v875
    %902 = vmatmul.f32.gmra.mxu0 %v884
    %v903 = vpop.f32.mrf.mxu0
    %v904 = vadd.f32 %v881, %v903
    %905 = vdwg.mxu0
    %v906 = vmax.f32 %v904, 0.0
    %v907 = vld [vmem:[%s20] sm:$0xff]
    %v908 = vld [vmem:[%s20 + $0x8] sm:$0xff]
    %v909 = vld [vmem:[%s20 + $0x10] sm:$0xff]
    %v910 = vld [vmem:[%s20 + $0x18] sm:$0xff]
    %v911 = vld [vmem:[%s20 + $0x20] sm:$0xff]
    %v912 = vld [vmem:[%s20 + $0x28] sm:$0xff]
    %v913 = vld [vmem:[%s20 + $0x30] sm:$0xff]
    %v914 = vld [vmem:[%s20 + $0x38] sm:$0xff]
    %v915 = vld [vmem:[%s21] sm:$0x1]
    %v917 = vperm.slane %v915, 0
    %v920 = vsel %vm248, %v906, 0
    %922 = vmatpush.msra.mxu0 0.0
    %923 = vmatpush.msra.mxu0 0.0
    %924 = vmatpush.msra.mxu0 0.0
    %925 = vmatpush.msra.mxu0 0.0
    %926 = vmatpush.msra.mxu0 0.0
    %927 = vmatpush.msra.mxu0 0.0
    %928 = vmatpush.msra.mxu0 0.0
    %929 = vmatpush.msra.mxu0 0.0
    %930 = vmatpush.msra.mxu0 %v914
    %931 = vmatpush.msra.mxu0 %v913
    %932 = vmatpush.msra.mxu0 %v912
    %933 = vmatpush.msra.mxu0 %v911
    %934 = vmatpush.msra.mxu0 %v910
    %935 = vmatpush.msra.mxu0 %v909
    %936 = vmatpush.msra.mxu0 %v908
    %937 = vmatpush.msra.mxu0 %v907
    %938 = vmatmul.f32.gmra.mxu0 %v920
    %v939 = vpop.f32.mrf.mxu0
    %v940 = vadd.f32 %v917, %v939
    %941 = vdwg.mxu0
    %943 = vset.pattern.permute.xlu0 6
    %944 = vperm.xlu0 %943, %v940
    %v945 = vpop.permute.xlu0 %944
    %v947 = vadd.f32 %v945, %v940
    %vm948 = vcmask 41984
    %v949 = vsel %vm948, %v940, 0.0
    %950 = vadd.xlane.f32.xlu0 %v949
    %v951 = vpop.xlane.xlu0 %950
    %v952 = vrcp.pop 6.0
    %v953 = vmul.f32 6.0, %v952
    %v954 = vsub.f32 1.0, %v953
    %v955 = vmul.f32 %v952, %v954
    %v956 = vadd.f32 %v952, %v955
    %vm957 = vweird.f32 %v952
    %v958 = vsel %vm957, %v952, %v956
    %v959 = vmul.f32 %v951, %v958
    %v960 = vsub.f32 %v947, %v959
    %961 = vst.msk [vmem:[#allocation2] sm:$0x3] %vm948, %v960
    // Predicated region
    $region90: #{forward.1} parent=1 // pred_check
      _
    $region91: #{forward.1} parent=1 // pred_check_branch
      %963 = sbr.rel (0) target = $region93
    $region92: #{forward.1} parent=1 // pred_region
      %965 = vsyncadd [#allocation3], 0
      %s967 = sshll.u32 [#allocation2], 4
      %s968 = int_to_ptr.vmem [resolvable:$true] %s967
      %s969 = sshll.u32 %s22, 4
      %s970 = int_to_ptr.hbm [resolvable:$true] %s969
      %972 = dma.vmem_to_hbm [thread:$0]  %s968, 32, %s970, [#allocation3]
    $region93: #{forward.1} parent=1 // pred_fallthru
      _
    // Predicated region
    $region94: #{forward.1} parent=1 // pred_check
      _
    $region95: #{forward.1} parent=1 // pred_check_branch
      %974 = sbr.rel (0) target = $region97
    $region96: #{forward.1} parent=1 // pred_region
      %976 = dma.done [#allocation3], 32
    $region97: #{forward.1} parent=1 // pred_fallthru
      _
    %977 = vsyncpa [#allocation3], 1

</llo_original>
